<compile_context>
chip_gen: v7x
topology: tpu7x:2x2x1
jax: 0.10.0
libtpu: 0.0.40
codegen_flags: <defaults>
</compile_context>

<pallas_src>
import functools

import numpy as np
import jax
import jax.numpy as jnp
from jax import lax
from jax.experimental import pallas as pl
from jax.experimental.pallas import tpu as pltpu


def _round_up(x, m):
    return ((x + m - 1) // m) * m


def _pick_tiling(L):
    """Choose (L_pad, tq).

    The two f32 (tq, L_pad) score/prob blocks are bounded by a fixed VMEM
    budget, tq stays MXU-tile aligned (multiples of 128, larger preferred),
    and L is padded so the padded sequence is a whole number of chunks (the
    ragged tail is handled by padding + key masking in the kernel).
    """
    score_budget = 8 * 1024 * 1024           # ~2 x f32 (tq, L_pad) per chunk
    L8 = _round_up(L, 8)                      # sublane alignment
    if 2 * L8 * L8 * 4 <= score_budget:
        return L8, L8                         # whole padded sequence, one chunk
    cap = score_budget // (8 * L8)
    cands = [c for c in (512, 256, 128) if c <= cap] or [128]
    for c in cands:                           # largest chunk that divides L8
        if L8 % c == 0:
            return L8, c
    best = min(cands, key=lambda c: (_round_up(L, c), -c))
    return _round_up(L, best), best


def _encoder_kernel(x_hbm, o_hbm, *scratch, num_layers, tq, l_valid, staged_io):
    """All encoder layers for one batch element; state never leaves VMEM."""
    if staged_io:
        x_cur, kt_s, v_s, io_buf = scratch
    else:
        x_cur, kt_s, v_s = scratch
        io_buf = None

    b = pl.program_id(0)
    L, D = x_cur.shape
    n_chunks = L // tq
    mxu_dtype = v_s.dtype
    masked = l_valid < L                      # static: only when L was padded

    # ---- load this batch element once; it stays VMEM-resident for all layers.
    if staged_io:
        pltpu.sync_copy(x_hbm.at[b], io_buf)
        x_cur[...] = io_buf[...].astype(jnp.float32)
    else:
        pltpu.sync_copy(x_hbm.at[b], x_cur)

    def q_chunk(ci, carry):
        start = pl.multiple_of(ci * tq, tq)
        q = x_cur[pl.ds(start, tq), :]                          # (tq, D) f32
        # scores = q @ k^T on the MXU (f32 accumulation); kT hoisted per layer.
        s = jnp.dot(q.astype(mxu_dtype), kt_s[...],
                    preferred_element_type=jnp.float32)         # (tq, L)
        if masked:                                              # padded keys
            key_idx = lax.broadcasted_iota(jnp.int32, (tq, L), 1)
            s = jnp.where(key_idx < l_valid, s, -jnp.inf)
        # Numerically stable softmax; normalization deferred to one reciprocal.
        m = jnp.max(s, axis=-1, keepdims=True)
        p = jnp.exp(s - m)                                      # (tq, L) f32
        denom = jnp.sum(p, axis=-1, keepdims=True)              # (tq, 1)
        ctx = jnp.dot(p.astype(mxu_dtype), v_s[...],
                      preferred_element_type=jnp.float32)       # (tq, D)
        ctx = ctx * pl.reciprocal(denom, approx=False)          # exact: ~free
        # Residual add (dropout p=0.0 is identity).  In-place update is safe:
        # K/V were snapshotted into kt_s / v_s before the chunk loop.
        x_cur[pl.ds(start, tq), :] = ctx + q
        return carry

    def layer_body(_layer, carry):
        # Snapshot K^T and V for this layer once, in the MXU operand dtype.
        v_s[...] = x_cur[...].astype(mxu_dtype)
        kt_s[...] = jnp.transpose(x_cur[...]).astype(mxu_dtype)
        lax.fori_loop(0, n_chunks, q_chunk, carry, unroll=(n_chunks <= 8))
        return carry

    # Unrolled layer loop (typically 6 iters) so the LLO scheduler can overlap
    # one layer's epilogue with the next layer's K/V snapshot and first QK^T.
    lax.fori_loop(0, num_layers, layer_body, 0, unroll=True)

    # ---- write the result back to HBM once.
    if staged_io:
        io_buf[...] = x_cur[...].astype(io_buf.dtype)
        pltpu.sync_copy(io_buf, o_hbm.at[b])
    else:
        pltpu.sync_copy(x_cur, o_hbm.at[b])


def attention_encoder(x, num_layers=6, use_bf16_mxu=True):
    """Pallas implementation of AttentionEncoder.forward on x: [B, L, D]."""
    B, L, D = x.shape
    L_pad, tq = _pick_tiling(L)
    D_pad = _round_up(D, 128)                 # lane-dense last dim

    if use_bf16_mxu and (x.dtype == jnp.float32 or x.dtype == jnp.bfloat16):
        mxu_dtype = jnp.bfloat16              # bf16 MXU fast path, f32 accum
    else:
        mxu_dtype = x.dtype
    staged_io = x.dtype != jnp.float32        # stage I/O only if dtype != state

    xp = x
    if L_pad != L or D_pad != D:
        xp = jnp.pad(x, ((0, 0), (0, L_pad - L), (0, D_pad - D)))

    scratch_shapes = [
        pltpu.VMEM((L_pad, D_pad), jnp.float32),   # resident layer state
        pltpu.VMEM((D_pad, L_pad), mxu_dtype),     # K^T snapshot (per layer)
        pltpu.VMEM((L_pad, D_pad), mxu_dtype),     # V snapshot (per layer)
    ]
    if staged_io:
        scratch_shapes.append(pltpu.VMEM((L_pad, D_pad), xp.dtype))  # I/O stage

    # ---- VMEM accounting: derived from the footprint, clamped to the chip.
    io_item = np.dtype(xp.dtype).itemsize
    mxu_item = np.dtype(mxu_dtype).itemsize
    resident = L_pad * D_pad * (4 + 2 * mxu_item + (io_item if staged_io else 0))
    per_chunk = 2 * tq * L_pad * 4 + 6 * tq * D_pad * 4   # s/p blocks + temps
    footprint = resident + per_chunk
    try:
        vmem_cap = int(pltpu.get_tpu_info().vmem_capacity_bytes)
    except Exception:
        vmem_cap = 64 * 1024 * 1024            # conservative (v7x per-core VMEM)
    vmem_limit = max(min(int(footprint * 1.25) + (4 << 20), vmem_cap - (2 << 20)),
                     16 << 20)

    kernel = functools.partial(_encoder_kernel, num_layers=num_layers, tq=tq,
                               l_valid=L, staged_io=staged_io)

    out = pl.pallas_call(
        kernel,
        out_shape=jax.ShapeDtypeStruct((B, L_pad, D_pad), x.dtype),
        grid_spec=pltpu.PrefetchScalarGridSpec(
            num_scalar_prefetch=0,
            grid=(B,),
            # Raw HBM refs + one manual DMA in / out per batch element: avoids
            # auto double-buffered full (L, D) blocks (VMEM headroom on v7x);
            # the prefetch overlap those would buy is negligible next to
            # num_layers of attention per element.
            in_specs=[pl.BlockSpec(memory_space=pl.ANY)],
            out_specs=pl.BlockSpec(memory_space=pl.ANY),
            scratch_shapes=scratch_shapes,
        ),
        # NOTE: on v7x (2 TensorCores) B >= 2 per chip is needed to use both
        # cores with this grid; B == 1 would leave one core idle.
        compiler_params=pltpu.CompilerParams(
            dimension_semantics=("parallel",),
            vmem_limit_bytes=int(vmem_limit),
        ),
    )(xp)

    if L_pad != L or D_pad != D:
        out = out[:, :L, :D]
    return out


def _reference(x, num_layers=6):
    """Pure-JAX reference mirroring the PyTorch module."""
    for _ in range(num_layers):
        s = jnp.einsum('bld,bmd->blm', x, x)
        a = jax.nn.softmax(s, axis=-1)
        x = jnp.einsum('blm,bmd->bld', a, x) + x
    return x


if __name__ == "__main__":
    key = jax.random.PRNGKey(0)
    B, L, D = 2, 8, 32                 # small shapes consistent with [B, L, D]
    NUM_LAYERS = 6

    x = jax.random.normal(key, (B, L, D), dtype=jnp.float32)
    ref = _reference(x, num_layers=NUM_LAYERS)

    # Exact-MXU path (f32 operands): tight structural check.
    out_f32 = jax.block_until_ready(
        attention_encoder(x, num_layers=NUM_LAYERS, use_bf16_mxu=False))
    assert out_f32.shape == (B, L, D)
    assert jnp.allclose(out_f32, ref, atol=1e-2, rtol=1e-2), float(
        jnp.max(jnp.abs(out_f32 - ref)))

    # Default bf16-MXU fast path (f32 accumulation): looser tolerance because
    # bf16 operand rounding compounds across the 6 residual layers.
    out = jax.block_until_ready(attention_encoder(x, num_layers=NUM_LAYERS))
    assert out.shape == (B, L, D)
    assert jnp.allclose(out, ref, atol=3e-2, rtol=3e-2), float(
        jnp.max(jnp.abs(out - ref)))

    print("KERNEL_OK")
</pallas_src>

<mosaic_0001>
module attributes {stable_mosaic.version = 11 : i64} {
  func.func @_encoder_kernel(%arg0: i32, %arg1: memref<2x8x128xf32, #tpu.memory_space<any>>, %arg2: memref<2x8x128xf32, #tpu.memory_space<any>>, %arg3: memref<8x128xf32, #tpu.memory_space<vmem>>, %arg4: memref<128x8xf32, #tpu.memory_space<vmem>>, %arg5: memref<8x128xf32, #tpu.memory_space<vmem>>) attributes {dimension_semantics = [#tpu.dimension_semantics<parallel>], iteration_bounds = array<i64: 2>, scalar_prefetch = 0 : i64, scratch_operands = 3 : i64, tpu.core_type = #tpu.core_type<tc>, window_params = [{}, {}]} {
    "tpu.region"() ({
      %156 = tpu.sem_alloc : memref<!tpu.dma_semaphore, #tpu.memory_space<semaphore_mem>>
      %c0_i32_123 = arith.constant 0 : i32
      %c0_i32_124 = arith.constant 0 : i32
      %157 = tpu.memref_slice %arg1[%arg0, %c0_i32_123, %c0_i32_124] : memref<2x8x128xf32, #tpu.memory_space<any>> -> memref<1x8x128xf32, #tpu.memory_space<any>>
      %158 = tpu.memref_squeeze %157 : memref<1x8x128xf32, #tpu.memory_space<any>> -> memref<8x128xf32, #tpu.memory_space<any>>
      tpu.enqueue_dma source(%158 : memref<8x128xf32, #tpu.memory_space<any>>) target(%arg3 : memref<8x128xf32, #tpu.memory_space<vmem>>) target_semaphore(%156 : memref<!tpu.dma_semaphore, #tpu.memory_space<semaphore_mem>>)
      %c0_i32_125 = arith.constant 0 : i32
      %c0_i32_126 = arith.constant 0 : i32
      %159 = tpu.memref_slice %arg1[%arg0, %c0_i32_125, %c0_i32_126] : memref<2x8x128xf32, #tpu.memory_space<any>> -> memref<1x8x128xf32, #tpu.memory_space<any>>
      %160 = tpu.memref_squeeze %159 : memref<1x8x128xf32, #tpu.memory_space<any>> -> memref<8x128xf32, #tpu.memory_space<any>>
      tpu.wait_dma2 semaphore(%156 : memref<!tpu.dma_semaphore, #tpu.memory_space<semaphore_mem>>) src(%160 : memref<8x128xf32, #tpu.memory_space<any>>) dst(%arg3 : memref<8x128xf32, #tpu.memory_space<vmem>>)
      tpu.yield
    }) : () -> ()
    %c0_i32 = arith.constant 0 : i32
    %c0 = arith.constant 0 : index
    %c0_0 = arith.constant 0 : index
    %0 = vector.load %arg3[%c0, %c0_0] : memref<8x128xf32, #tpu.memory_space<vmem>>, vector<8x128xf32>
    %c0_1 = arith.constant 0 : index
    %c0_2 = arith.constant 0 : index
    %1 = vector.load %arg5[%c0_1, %c0_2] : memref<8x128xf32, #tpu.memory_space<vmem>>, vector<8x128xf32>
    tpu.vector_store %arg5[%c0_1, %c0_2], %0 {strides = array<i32>} : memref<8x128xf32, #tpu.memory_space<vmem>>, vector<8x128xf32>,
    %c0_3 = arith.constant 0 : index
    %c0_4 = arith.constant 0 : index
    %2 = vector.load %arg3[%c0_3, %c0_4] : memref<8x128xf32, #tpu.memory_space<vmem>>, vector<8x128xf32>
    %3 = tpu.transpose %2, [1, 0] : vector<8x128xf32> -> vector<128x8xf32>
    %c0_5 = arith.constant 0 : index
    %c0_6 = arith.constant 0 : index
    %4 = vector.load %arg4[%c0_5, %c0_6] : memref<128x8xf32, #tpu.memory_space<vmem>>, vector<128x8xf32>
    tpu.vector_store %arg4[%c0_5, %c0_6], %3 {strides = array<i32>} : memref<128x8xf32, #tpu.memory_space<vmem>>, vector<128x8xf32>,
    %c0_i32_7 = arith.constant 0 : i32
    %c8_i32 = arith.constant 8 : i32
    %5 = arith.muli %c0_i32_7, %c8_i32 : i32
    %6 = tpu.assume_multiple %5, 8 : i32
    %7 = arith.index_cast %6 : i32 to index
    %c0_8 = arith.constant 0 : index
    %8 = vector.load %arg3[%7, %c0_8] : memref<8x128xf32, #tpu.memory_space<vmem>>, vector<8x128xf32>
    %c0_9 = arith.constant 0 : index
    %c0_10 = arith.constant 0 : index
    %9 = vector.load %arg4[%c0_9, %c0_10] : memref<128x8xf32, #tpu.memory_space<vmem>>, vector<128x8xf32>
    %cst = arith.constant dense<0.000000e+00> : vector<8x8xf32>
    %10 = tpu.matmul %8, %9, %cst {dimension_numbers = #tpu.dot_dimension_numbers<[1], [0], [0], [1], [0, 0, 1, 1], [], []>} : vector<8x128xf32>, vector<128x8xf32>, vector<8x8xf32> -> vector<8x8xf32>
    %cst_11 = arith.constant dense<0xFF800000> : vector<8xf32>
    %11 = vector.multi_reduction <maximumf>, %10, %cst_11 [1] : vector<8x8xf32> to vector<8xf32>
    %12 = vector.shape_cast %11 : vector<8xf32> to vector<8x1xf32>
    %13 = vector.broadcast %12 : vector<8x1xf32> to vector<8x8xf32>
    %14 = arith.subf %10, %13 : vector<8x8xf32>
    %15 = math.exp %14 : vector<8x8xf32>
    %cst_12 = arith.constant dense<0.000000e+00> : vector<8xf32>
    %16 = vector.multi_reduction <add>, %15, %cst_12 [1] : vector<8x8xf32> to vector<8xf32>
    %17 = vector.shape_cast %16 : vector<8xf32> to vector<8x1xf32>
    %c0_13 = arith.constant 0 : index
    %c0_14 = arith.constant 0 : index
    %18 = vector.load %arg5[%c0_13, %c0_14] : memref<8x128xf32, #tpu.memory_space<vmem>>, vector<8x128xf32>
    %cst_15 = arith.constant dense<0.000000e+00> : vector<8x128xf32>
    %19 = tpu.matmul %15, %18, %cst_15 {dimension_numbers = #tpu.dot_dimension_numbers<[1], [0], [0], [1], [0, 0, 1, 1], [], []>} : vector<8x8xf32>, vector<8x128xf32>, vector<8x128xf32> -> vector<8x128xf32>
    %20 = tpu.reciprocal %17 : vector<8x1xf32> -> vector<8x1xf32>
    %21 = vector.broadcast %20 : vector<8x1xf32> to vector<8x128xf32>
    %22 = arith.mulf %19, %21 : vector<8x128xf32>
    %23 = arith.addf %22, %8 : vector<8x128xf32>
    %24 = arith.index_cast %6 : i32 to index
    %c0_16 = arith.constant 0 : index
    %25 = vector.load %arg3[%24, %c0_16] : memref<8x128xf32, #tpu.memory_space<vmem>>, vector<8x128xf32>
    tpu.vector_store %arg3[%24, %c0_16], %23 {strides = array<i32>} : memref<8x128xf32, #tpu.memory_space<vmem>>, vector<8x128xf32>,
    %c1_i32 = arith.constant 1 : i32
    %c1_i32_17 = arith.constant 1 : i32
    %c0_18 = arith.constant 0 : index
    %c0_19 = arith.constant 0 : index
    %26 = vector.load %arg3[%c0_18, %c0_19] : memref<8x128xf32, #tpu.memory_space<vmem>>, vector<8x128xf32>
    %c0_20 = arith.constant 0 : index
    %c0_21 = arith.constant 0 : index
    %27 = vector.load %arg5[%c0_20, %c0_21] : memref<8x128xf32, #tpu.memory_space<vmem>>, vector<8x128xf32>
    tpu.vector_store %arg5[%c0_20, %c0_21], %26 {strides = array<i32>} : memref<8x128xf32, #tpu.memory_space<vmem>>, vector<8x128xf32>,
    %c0_22 = arith.constant 0 : index
    %c0_23 = arith.constant 0 : index
    %28 = vector.load %arg3[%c0_22, %c0_23] : memref<8x128xf32, #tpu.memory_space<vmem>>, vector<8x128xf32>
    %29 = tpu.transpose %28, [1, 0] : vector<8x128xf32> -> vector<128x8xf32>
    %c0_24 = arith.constant 0 : index
    %c0_25 = arith.constant 0 : index
    %30 = vector.load %arg4[%c0_24, %c0_25] : memref<128x8xf32, #tpu.memory_space<vmem>>, vector<128x8xf32>
    tpu.vector_store %arg4[%c0_24, %c0_25], %29 {strides = array<i32>} : memref<128x8xf32, #tpu.memory_space<vmem>>, vector<128x8xf32>,
    %c0_i32_26 = arith.constant 0 : i32
    %c8_i32_27 = arith.constant 8 : i32
    %31 = arith.muli %c0_i32_26, %c8_i32_27 : i32
    %32 = tpu.assume_multiple %31, 8 : i32
    %33 = arith.index_cast %32 : i32 to index
    %c0_28 = arith.constant 0 : index
    %34 = vector.load %arg3[%33, %c0_28] : memref<8x128xf32, #tpu.memory_space<vmem>>, vector<8x128xf32>
    %c0_29 = arith.constant 0 : index
    %c0_30 = arith.constant 0 : index
    %35 = vector.load %arg4[%c0_29, %c0_30] : memref<128x8xf32, #tpu.memory_space<vmem>>, vector<128x8xf32>
    %cst_31 = arith.constant dense<0.000000e+00> : vector<8x8xf32>
    %36 = tpu.matmul %34, %35, %cst_31 {dimension_numbers = #tpu.dot_dimension_numbers<[1], [0], [0], [1], [0, 0, 1, 1], [], []>} : vector<8x128xf32>, vector<128x8xf32>, vector<8x8xf32> -> vector<8x8xf32>
    %cst_32 = arith.constant dense<0xFF800000> : vector<8xf32>
    %37 = vector.multi_reduction <maximumf>, %36, %cst_32 [1] : vector<8x8xf32> to vector<8xf32>
    %38 = vector.shape_cast %37 : vector<8xf32> to vector<8x1xf32>
    %39 = vector.broadcast %38 : vector<8x1xf32> to vector<8x8xf32>
    %40 = arith.subf %36, %39 : vector<8x8xf32>
    %41 = math.exp %40 : vector<8x8xf32>
    %cst_33 = arith.constant dense<0.000000e+00> : vector<8xf32>
    %42 = vector.multi_reduction <add>, %41, %cst_33 [1] : vector<8x8xf32> to vector<8xf32>
    %43 = vector.shape_cast %42 : vector<8xf32> to vector<8x1xf32>
    %c0_34 = arith.constant 0 : index
    %c0_35 = arith.constant 0 : index
    %44 = vector.load %arg5[%c0_34, %c0_35] : memref<8x128xf32, #tpu.memory_space<vmem>>, vector<8x128xf32>
    %cst_36 = arith.constant dense<0.000000e+00> : vector<8x128xf32>
    %45 = tpu.matmul %41, %44, %cst_36 {dimension_numbers = #tpu.dot_dimension_numbers<[1], [0], [0], [1], [0, 0, 1, 1], [], []>} : vector<8x8xf32>, vector<8x128xf32>, vector<8x128xf32> -> vector<8x128xf32>
    %46 = tpu.reciprocal %43 : vector<8x1xf32> -> vector<8x1xf32>
    %47 = vector.broadcast %46 : vector<8x1xf32> to vector<8x128xf32>
    %48 = arith.mulf %45, %47 : vector<8x128xf32>
    %49 = arith.addf %48, %34 : vector<8x128xf32>
    %50 = arith.index_cast %32 : i32 to index
    %c0_37 = arith.constant 0 : index
    %51 = vector.load %arg3[%50, %c0_37] : memref<8x128xf32, #tpu.memory_space<vmem>>, vector<8x128xf32>
    tpu.vector_store %arg3[%50, %c0_37], %49 {strides = array<i32>} : memref<8x128xf32, #tpu.memory_space<vmem>>, vector<8x128xf32>,
    %c1_i32_38 = arith.constant 1 : i32
    %c2_i32 = arith.constant 2 : i32
    %c0_39 = arith.constant 0 : index
    %c0_40 = arith.constant 0 : index
    %52 = vector.load %arg3[%c0_39, %c0_40] : memref<8x128xf32, #tpu.memory_space<vmem>>, vector<8x128xf32>
    %c0_41 = arith.constant 0 : index
    %c0_42 = arith.constant 0 : index
    %53 = vector.load %arg5[%c0_41, %c0_42] : memref<8x128xf32, #tpu.memory_space<vmem>>, vector<8x128xf32>
    tpu.vector_store %arg5[%c0_41, %c0_42], %52 {strides = array<i32>} : memref<8x128xf32, #tpu.memory_space<vmem>>, vector<8x128xf32>,
    %c0_43 = arith.constant 0 : index
    %c0_44 = arith.constant 0 : index
    %54 = vector.load %arg3[%c0_43, %c0_44] : memref<8x128xf32, #tpu.memory_space<vmem>>, vector<8x128xf32>
    %55 = tpu.transpose %54, [1, 0] : vector<8x128xf32> -> vector<128x8xf32>
    %c0_45 = arith.constant 0 : index
    %c0_46 = arith.constant 0 : index
    %56 = vector.load %arg4[%c0_45, %c0_46] : memref<128x8xf32, #tpu.memory_space<vmem>>, vector<128x8xf32>
    tpu.vector_store %arg4[%c0_45, %c0_46], %55 {strides = array<i32>} : memref<128x8xf32, #tpu.memory_space<vmem>>, vector<128x8xf32>,
    %c0_i32_47 = arith.constant 0 : i32
    %c8_i32_48 = arith.constant 8 : i32
    %57 = arith.muli %c0_i32_47, %c8_i32_48 : i32
    %58 = tpu.assume_multiple %57, 8 : i32
    %59 = arith.index_cast %58 : i32 to index
    %c0_49 = arith.constant 0 : index
    %60 = vector.load %arg3[%59, %c0_49] : memref<8x128xf32, #tpu.memory_space<vmem>>, vector<8x128xf32>
    %c0_50 = arith.constant 0 : index
    %c0_51 = arith.constant 0 : index
    %61 = vector.load %arg4[%c0_50, %c0_51] : memref<128x8xf32, #tpu.memory_space<vmem>>, vector<128x8xf32>
    %cst_52 = arith.constant dense<0.000000e+00> : vector<8x8xf32>
    %62 = tpu.matmul %60, %61, %cst_52 {dimension_numbers = #tpu.dot_dimension_numbers<[1], [0], [0], [1], [0, 0, 1, 1], [], []>} : vector<8x128xf32>, vector<128x8xf32>, vector<8x8xf32> -> vector<8x8xf32>
    %cst_53 = arith.constant dense<0xFF800000> : vector<8xf32>
    %63 = vector.multi_reduction <maximumf>, %62, %cst_53 [1] : vector<8x8xf32> to vector<8xf32>
    %64 = vector.shape_cast %63 : vector<8xf32> to vector<8x1xf32>
    %65 = vector.broadcast %64 : vector<8x1xf32> to vector<8x8xf32>
    %66 = arith.subf %62, %65 : vector<8x8xf32>
    %67 = math.exp %66 : vector<8x8xf32>
    %cst_54 = arith.constant dense<0.000000e+00> : vector<8xf32>
    %68 = vector.multi_reduction <add>, %67, %cst_54 [1] : vector<8x8xf32> to vector<8xf32>
    %69 = vector.shape_cast %68 : vector<8xf32> to vector<8x1xf32>
    %c0_55 = arith.constant 0 : index
    %c0_56 = arith.constant 0 : index
    %70 = vector.load %arg5[%c0_55, %c0_56] : memref<8x128xf32, #tpu.memory_space<vmem>>, vector<8x128xf32>
    %cst_57 = arith.constant dense<0.000000e+00> : vector<8x128xf32>
    %71 = tpu.matmul %67, %70, %cst_57 {dimension_numbers = #tpu.dot_dimension_numbers<[1], [0], [0], [1], [0, 0, 1, 1], [], []>} : vector<8x8xf32>, vector<8x128xf32>, vector<8x128xf32> -> vector<8x128xf32>
    %72 = tpu.reciprocal %69 : vector<8x1xf32> -> vector<8x1xf32>
    %73 = vector.broadcast %72 : vector<8x1xf32> to vector<8x128xf32>
    %74 = arith.mulf %71, %73 : vector<8x128xf32>
    %75 = arith.addf %74, %60 : vector<8x128xf32>
    %76 = arith.index_cast %58 : i32 to index
    %c0_58 = arith.constant 0 : index
    %77 = vector.load %arg3[%76, %c0_58] : memref<8x128xf32, #tpu.memory_space<vmem>>, vector<8x128xf32>
    tpu.vector_store %arg3[%76, %c0_58], %75 {strides = array<i32>} : memref<8x128xf32, #tpu.memory_space<vmem>>, vector<8x128xf32>,
    %c1_i32_59 = arith.constant 1 : i32
    %c3_i32 = arith.constant 3 : i32
    %c0_60 = arith.constant 0 : index
    %c0_61 = arith.constant 0 : index
    %78 = vector.load %arg3[%c0_60, %c0_61] : memref<8x128xf32, #tpu.memory_space<vmem>>, vector<8x128xf32>
    %c0_62 = arith.constant 0 : index
    %c0_63 = arith.constant 0 : index
    %79 = vector.load %arg5[%c0_62, %c0_63] : memref<8x128xf32, #tpu.memory_space<vmem>>, vector<8x128xf32>
    tpu.vector_store %arg5[%c0_62, %c0_63], %78 {strides = array<i32>} : memref<8x128xf32, #tpu.memory_space<vmem>>, vector<8x128xf32>,
    %c0_64 = arith.constant 0 : index
    %c0_65 = arith.constant 0 : index
    %80 = vector.load %arg3[%c0_64, %c0_65] : memref<8x128xf32, #tpu.memory_space<vmem>>, vector<8x128xf32>
    %81 = tpu.transpose %80, [1, 0] : vector<8x128xf32> -> vector<128x8xf32>
    %c0_66 = arith.constant 0 : index
    %c0_67 = arith.constant 0 : index
    %82 = vector.load %arg4[%c0_66, %c0_67] : memref<128x8xf32, #tpu.memory_space<vmem>>, vector<128x8xf32>
    tpu.vector_store %arg4[%c0_66, %c0_67], %81 {strides = array<i32>} : memref<128x8xf32, #tpu.memory_space<vmem>>, vector<128x8xf32>,
    %c0_i32_68 = arith.constant 0 : i32
    %c8_i32_69 = arith.constant 8 : i32
    %83 = arith.muli %c0_i32_68, %c8_i32_69 : i32
    %84 = tpu.assume_multiple %83, 8 : i32
    %85 = arith.index_cast %84 : i32 to index
    %c0_70 = arith.constant 0 : index
    %86 = vector.load %arg3[%85, %c0_70] : memref<8x128xf32, #tpu.memory_space<vmem>>, vector<8x128xf32>
    %c0_71 = arith.constant 0 : index
    %c0_72 = arith.constant 0 : index
    %87 = vector.load %arg4[%c0_71, %c0_72] : memref<128x8xf32, #tpu.memory_space<vmem>>, vector<128x8xf32>
    %cst_73 = arith.constant dense<0.000000e+00> : vector<8x8xf32>
    %88 = tpu.matmul %86, %87, %cst_73 {dimension_numbers = #tpu.dot_dimension_numbers<[1], [0], [0], [1], [0, 0, 1, 1], [], []>} : vector<8x128xf32>, vector<128x8xf32>, vector<8x8xf32> -> vector<8x8xf32>
    %cst_74 = arith.constant dense<0xFF800000> : vector<8xf32>
    %89 = vector.multi_reduction <maximumf>, %88, %cst_74 [1] : vector<8x8xf32> to vector<8xf32>
    %90 = vector.shape_cast %89 : vector<8xf32> to vector<8x1xf32>
    %91 = vector.broadcast %90 : vector<8x1xf32> to vector<8x8xf32>
    %92 = arith.subf %88, %91 : vector<8x8xf32>
    %93 = math.exp %92 : vector<8x8xf32>
    %cst_75 = arith.constant dense<0.000000e+00> : vector<8xf32>
    %94 = vector.multi_reduction <add>, %93, %cst_75 [1] : vector<8x8xf32> to vector<8xf32>
    %95 = vector.shape_cast %94 : vector<8xf32> to vector<8x1xf32>
    %c0_76 = arith.constant 0 : index
    %c0_77 = arith.constant 0 : index
    %96 = vector.load %arg5[%c0_76, %c0_77] : memref<8x128xf32, #tpu.memory_space<vmem>>, vector<8x128xf32>
    %cst_78 = arith.constant dense<0.000000e+00> : vector<8x128xf32>
    %97 = tpu.matmul %93, %96, %cst_78 {dimension_numbers = #tpu.dot_dimension_numbers<[1], [0], [0], [1], [0, 0, 1, 1], [], []>} : vector<8x8xf32>, vector<8x128xf32>, vector<8x128xf32> -> vector<8x128xf32>
    %98 = tpu.reciprocal %95 : vector<8x1xf32> -> vector<8x1xf32>
    %99 = vector.broadcast %98 : vector<8x1xf32> to vector<8x128xf32>
    %100 = arith.mulf %97, %99 : vector<8x128xf32>
    %101 = arith.addf %100, %86 : vector<8x128xf32>
    %102 = arith.index_cast %84 : i32 to index
    %c0_79 = arith.constant 0 : index
    %103 = vector.load %arg3[%102, %c0_79] : memref<8x128xf32, #tpu.memory_space<vmem>>, vector<8x128xf32>
    tpu.vector_store %arg3[%102, %c0_79], %101 {strides = array<i32>} : memref<8x128xf32, #tpu.memory_space<vmem>>, vector<8x128xf32>,
    %c1_i32_80 = arith.constant 1 : i32
    %c4_i32 = arith.constant 4 : i32
    %c0_81 = arith.constant 0 : index
    %c0_82 = arith.constant 0 : index
    %104 = vector.load %arg3[%c0_81, %c0_82] : memref<8x128xf32, #tpu.memory_space<vmem>>, vector<8x128xf32>
    %c0_83 = arith.constant 0 : index
    %c0_84 = arith.constant 0 : index
    %105 = vector.load %arg5[%c0_83, %c0_84] : memref<8x128xf32, #tpu.memory_space<vmem>>, vector<8x128xf32>
    tpu.vector_store %arg5[%c0_83, %c0_84], %104 {strides = array<i32>} : memref<8x128xf32, #tpu.memory_space<vmem>>, vector<8x128xf32>,
    %c0_85 = arith.constant 0 : index
    %c0_86 = arith.constant 0 : index
    %106 = vector.load %arg3[%c0_85, %c0_86] : memref<8x128xf32, #tpu.memory_space<vmem>>, vector<8x128xf32>
    %107 = tpu.transpose %106, [1, 0] : vector<8x128xf32> -> vector<128x8xf32>
    %c0_87 = arith.constant 0 : index
    %c0_88 = arith.constant 0 : index
    %108 = vector.load %arg4[%c0_87, %c0_88] : memref<128x8xf32, #tpu.memory_space<vmem>>, vector<128x8xf32>
    tpu.vector_store %arg4[%c0_87, %c0_88], %107 {strides = array<i32>} : memref<128x8xf32, #tpu.memory_space<vmem>>, vector<128x8xf32>,
    %c0_i32_89 = arith.constant 0 : i32
    %c8_i32_90 = arith.constant 8 : i32
    %109 = arith.muli %c0_i32_89, %c8_i32_90 : i32
    %110 = tpu.assume_multiple %109, 8 : i32
    %111 = arith.index_cast %110 : i32 to index
    %c0_91 = arith.constant 0 : index
    %112 = vector.load %arg3[%111, %c0_91] : memref<8x128xf32, #tpu.memory_space<vmem>>, vector<8x128xf32>
    %c0_92 = arith.constant 0 : index
    %c0_93 = arith.constant 0 : index
    %113 = vector.load %arg4[%c0_92, %c0_93] : memref<128x8xf32, #tpu.memory_space<vmem>>, vector<128x8xf32>
    %cst_94 = arith.constant dense<0.000000e+00> : vector<8x8xf32>
    %114 = tpu.matmul %112, %113, %cst_94 {dimension_numbers = #tpu.dot_dimension_numbers<[1], [0], [0], [1], [0, 0, 1, 1], [], []>} : vector<8x128xf32>, vector<128x8xf32>, vector<8x8xf32> -> vector<8x8xf32>
    %cst_95 = arith.constant dense<0xFF800000> : vector<8xf32>
    %115 = vector.multi_reduction <maximumf>, %114, %cst_95 [1] : vector<8x8xf32> to vector<8xf32>
    %116 = vector.shape_cast %115 : vector<8xf32> to vector<8x1xf32>
    %117 = vector.broadcast %116 : vector<8x1xf32> to vector<8x8xf32>
    %118 = arith.subf %114, %117 : vector<8x8xf32>
    %119 = math.exp %118 : vector<8x8xf32>
    %cst_96 = arith.constant dense<0.000000e+00> : vector<8xf32>
    %120 = vector.multi_reduction <add>, %119, %cst_96 [1] : vector<8x8xf32> to vector<8xf32>
    %121 = vector.shape_cast %120 : vector<8xf32> to vector<8x1xf32>
    %c0_97 = arith.constant 0 : index
    %c0_98 = arith.constant 0 : index
    %122 = vector.load %arg5[%c0_97, %c0_98] : memref<8x128xf32, #tpu.memory_space<vmem>>, vector<8x128xf32>
    %cst_99 = arith.constant dense<0.000000e+00> : vector<8x128xf32>
    %123 = tpu.matmul %119, %122, %cst_99 {dimension_numbers = #tpu.dot_dimension_numbers<[1], [0], [0], [1], [0, 0, 1, 1], [], []>} : vector<8x8xf32>, vector<8x128xf32>, vector<8x128xf32> -> vector<8x128xf32>
    %124 = tpu.reciprocal %121 : vector<8x1xf32> -> vector<8x1xf32>
    %125 = vector.broadcast %124 : vector<8x1xf32> to vector<8x128xf32>
    %126 = arith.mulf %123, %125 : vector<8x128xf32>
    %127 = arith.addf %126, %112 : vector<8x128xf32>
    %128 = arith.index_cast %110 : i32 to index
    %c0_100 = arith.constant 0 : index
    %129 = vector.load %arg3[%128, %c0_100] : memref<8x128xf32, #tpu.memory_space<vmem>>, vector<8x128xf32>
    tpu.vector_store %arg3[%128, %c0_100], %127 {strides = array<i32>} : memref<8x128xf32, #tpu.memory_space<vmem>>, vector<8x128xf32>,
    %c1_i32_101 = arith.constant 1 : i32
    %c5_i32 = arith.constant 5 : i32
    %c0_102 = arith.constant 0 : index
    %c0_103 = arith.constant 0 : index
    %130 = vector.load %arg3[%c0_102, %c0_103] : memref<8x128xf32, #tpu.memory_space<vmem>>, vector<8x128xf32>
    %c0_104 = arith.constant 0 : index
    %c0_105 = arith.constant 0 : index
    %131 = vector.load %arg5[%c0_104, %c0_105] : memref<8x128xf32, #tpu.memory_space<vmem>>, vector<8x128xf32>
    tpu.vector_store %arg5[%c0_104, %c0_105], %130 {strides = array<i32>} : memref<8x128xf32, #tpu.memory_space<vmem>>, vector<8x128xf32>,
    %c0_106 = arith.constant 0 : index
    %c0_107 = arith.constant 0 : index
    %132 = vector.load %arg3[%c0_106, %c0_107] : memref<8x128xf32, #tpu.memory_space<vmem>>, vector<8x128xf32>
    %133 = tpu.transpose %132, [1, 0] : vector<8x128xf32> -> vector<128x8xf32>
    %c0_108 = arith.constant 0 : index
    %c0_109 = arith.constant 0 : index
    %134 = vector.load %arg4[%c0_108, %c0_109] : memref<128x8xf32, #tpu.memory_space<vmem>>, vector<128x8xf32>
    tpu.vector_store %arg4[%c0_108, %c0_109], %133 {strides = array<i32>} : memref<128x8xf32, #tpu.memory_space<vmem>>, vector<128x8xf32>,
    %c0_i32_110 = arith.constant 0 : i32
    %c8_i32_111 = arith.constant 8 : i32
    %135 = arith.muli %c0_i32_110, %c8_i32_111 : i32
    %136 = tpu.assume_multiple %135, 8 : i32
    %137 = arith.index_cast %136 : i32 to index
    %c0_112 = arith.constant 0 : index
    %138 = vector.load %arg3[%137, %c0_112] : memref<8x128xf32, #tpu.memory_space<vmem>>, vector<8x128xf32>
    %c0_113 = arith.constant 0 : index
    %c0_114 = arith.constant 0 : index
    %139 = vector.load %arg4[%c0_113, %c0_114] : memref<128x8xf32, #tpu.memory_space<vmem>>, vector<128x8xf32>
    %cst_115 = arith.constant dense<0.000000e+00> : vector<8x8xf32>
    %140 = tpu.matmul %138, %139, %cst_115 {dimension_numbers = #tpu.dot_dimension_numbers<[1], [0], [0], [1], [0, 0, 1, 1], [], []>} : vector<8x128xf32>, vector<128x8xf32>, vector<8x8xf32> -> vector<8x8xf32>
    %cst_116 = arith.constant dense<0xFF800000> : vector<8xf32>
    %141 = vector.multi_reduction <maximumf>, %140, %cst_116 [1] : vector<8x8xf32> to vector<8xf32>
    %142 = vector.shape_cast %141 : vector<8xf32> to vector<8x1xf32>
    %143 = vector.broadcast %142 : vector<8x1xf32> to vector<8x8xf32>
    %144 = arith.subf %140, %143 : vector<8x8xf32>
    %145 = math.exp %144 : vector<8x8xf32>
    %cst_117 = arith.constant dense<0.000000e+00> : vector<8xf32>
    %146 = vector.multi_reduction <add>, %145, %cst_117 [1] : vector<8x8xf32> to vector<8xf32>
    %147 = vector.shape_cast %146 : vector<8xf32> to vector<8x1xf32>
    %c0_118 = arith.constant 0 : index
    %c0_119 = arith.constant 0 : index
    %148 = vector.load %arg5[%c0_118, %c0_119] : memref<8x128xf32, #tpu.memory_space<vmem>>, vector<8x128xf32>
    %cst_120 = arith.constant dense<0.000000e+00> : vector<8x128xf32>
    %149 = tpu.matmul %145, %148, %cst_120 {dimension_numbers = #tpu.dot_dimension_numbers<[1], [0], [0], [1], [0, 0, 1, 1], [], []>} : vector<8x8xf32>, vector<8x128xf32>, vector<8x128xf32> -> vector<8x128xf32>
    %150 = tpu.reciprocal %147 : vector<8x1xf32> -> vector<8x1xf32>
    %151 = vector.broadcast %150 : vector<8x1xf32> to vector<8x128xf32>
    %152 = arith.mulf %149, %151 : vector<8x128xf32>
    %153 = arith.addf %152, %138 : vector<8x128xf32>
    %154 = arith.index_cast %136 : i32 to index
    %c0_121 = arith.constant 0 : index
    %155 = vector.load %arg3[%154, %c0_121] : memref<8x128xf32, #tpu.memory_space<vmem>>, vector<8x128xf32>
    tpu.vector_store %arg3[%154, %c0_121], %153 {strides = array<i32>} : memref<8x128xf32, #tpu.memory_space<vmem>>, vector<8x128xf32>,
    %c1_i32_122 = arith.constant 1 : i32
    "tpu.region"() ({
      %156 = tpu.sem_alloc : memref<!tpu.dma_semaphore, #tpu.memory_space<semaphore_mem>>
      %c0_i32_123 = arith.constant 0 : i32
      %c0_i32_124 = arith.constant 0 : i32
      %157 = tpu.memref_slice %arg2[%arg0, %c0_i32_123, %c0_i32_124] : memref<2x8x128xf32, #tpu.memory_space<any>> -> memref<1x8x128xf32, #tpu.memory_space<any>>
      %158 = tpu.memref_squeeze %157 : memref<1x8x128xf32, #tpu.memory_space<any>> -> memref<8x128xf32, #tpu.memory_space<any>>
      tpu.enqueue_dma source(%arg3 : memref<8x128xf32, #tpu.memory_space<vmem>>) target(%158 : memref<8x128xf32, #tpu.memory_space<any>>) target_semaphore(%156 : memref<!tpu.dma_semaphore, #tpu.memory_space<semaphore_mem>>)
      %c0_i32_125 = arith.constant 0 : i32
      %c0_i32_126 = arith.constant 0 : i32
      %159 = tpu.memref_slice %arg2[%arg0, %c0_i32_125, %c0_i32_126] : memref<2x8x128xf32, #tpu.memory_space<any>> -> memref<1x8x128xf32, #tpu.memory_space<any>>
      %160 = tpu.memref_squeeze %159 : memref<1x8x128xf32, #tpu.memory_space<any>> -> memref<8x128xf32, #tpu.memory_space<any>>
      tpu.wait_dma2 semaphore(%156 : memref<!tpu.dma_semaphore, #tpu.memory_space<semaphore_mem>>) src(%arg3 : memref<8x128xf32, #tpu.memory_space<vmem>>) dst(%160 : memref<8x128xf32, #tpu.memory_space<any>>)
      tpu.yield
    }) : () -> ()
    return
  }
}

</mosaic_0001>

<llo_original>
// kernel: tpu_custom_call.1
$region0: #{tpu_custom_call.1}
  #allocation0 [shape = 'u32[]', space=smem, size = 0x4, offset = 0x4, fixed_abs, tag = 'smem constant byte address 0x4 - core index']
  #allocation1 [shape = 'u32[144,128]{1,0:T(1,128)}', space=vmem, size = 0x12000, scoped, tag = 'internal scratch']
  #allocation2 [shape = 'f32[8,128]{1,0:T(8,128)}', space=vmem, size = 0x1000, scoped, tag = 'scratch operand']
  #allocation3 [shape = 'f32[128,8]{1,0:T(8,128)}', space=vmem, size = 0x10000, scoped, tag = 'scratch operand']
  #allocation4 [shape = 'f32[8,128]{1,0:T(8,128)}', space=vmem, size = 0x1000, scoped, tag = 'scratch operand']
  #allocation6 [shape = 's32[]', space=sflag, size = 0x4, offset = 0, fixed_abs, tag = 'sflag constant byte address 0x0 - dummy sync flag']
  #allocation7 [shape = 's32[]', space=sflag, size = 0x4, offset = 0, fixed_abs, tag = 'sflag constant byte address 0x0 - dummy sync flag']
  #allocation8 [shape = 'u32[]', space=smem, size = 0x4, offset = 0x44, fixed_abs, tag = 'smem constant byte address 0x44 - assertion arg 0']
  #allocation9 [shape = 'u32[]', space=smem, size = 0x4, offset = 0x48, fixed_abs, tag = 'smem constant byte address 0x48 - assertion arg 1']
  #allocation11 [shape = 's32[]', space=sflag, size = 0x4, offset = 0, fixed_abs, tag = 'sflag constant byte address 0x0 - dummy sync flag']
  #allocation12 [shape = 's32[]', space=sflag, size = 0x4, offset = 0, fixed_abs, tag = 'sflag constant byte address 0x0 - dummy sync flag']
  %s0 = inlined_call_operand.hbm [shape: f32[2,8,128], index: 0, kind: input, shape index: {}]
  %s1 = inlined_call_operand.hbm [shape: f32[2,8,128], index: 1, kind: output, shape index: {}]
  %s2 = sld [smem:[#allocation0]]
  $region19: #{tpu_custom_call.1} parent=0
    _
  %s4 = ssub.s32 1, %s2
  %s5 = scalar_select 0, %s4, %s2
  loop: start=0, step=1, limit=2
  $region2: #{tpu_custom_call.1} parent=0 // loop_pre_header
    _
  $region3: #{tpu_custom_call.1} parent=0 // loop_header
    %s7 = sphi 0, %s11
    %p8 = scmp.ge.s32.totalorder %s7, 2
  $region4: #{tpu_custom_call.1} parent=0 // loop_header_branch
    %10 = sbr.rel (%p8) target = $region8
  $region5: #{tpu_custom_call.1} parent=0 // loop_body
    %s12 = sadd.s32 %s7, 1
    $region9: #{tpu_custom_call.1} parent=5
      #allocation5 [shape = 's32[1]{0}', space=sflag, size = 0x4, scoped, tag = 'scoped memory for tpu_custom_call.1']
      %s13 = smul.u32 %s7, 8
      %s14 = smul.addr %s13, 16
      %s15 = scalar_lea.hbm %s0, %s14
      // Predicated region
      $region10: #{tpu_custom_call.1} parent=9 // pred_check
        _
      $region11: #{tpu_custom_call.1} parent=9 // pred_check_branch
        %17 = sbr.rel target = $region13
      $region12: #{tpu_custom_call.1} parent=9 // pred_region
        %18 = sst [smem:[#allocation8]] [#allocation7]
        %19 = sst [smem:[#allocation9]] [#allocation6]
      $region13: #{tpu_custom_call.1} parent=9 // pred_fallthru
        _
      %21 = shalt.err (0)
      %s23 = sshll.u32 [#allocation2], 4
      %s24 = int_to_ptr.vmem [resolvable:$true] %s23
      %26 = dma.hbm_to_vmem [thread:$0]  %s15, 128, %s24, [#allocation5]
      %s27 = smul.u32 8, 1
      %s28 = sshll.u32 %s27, 4
      %29 = dma.done [#allocation5], %s28
    %v30 = vld [vmem:[#allocation2] sm:$0xff]
    %31 = vst [vmem:[#allocation4] sm:$0xff] %v30
    %v32 = vld [vmem:[#allocation2] sm:$0xff]
    %33 = vxpose.xlu0.b32.start [1/16] %v32, 128
    %34 = vxpose.xlu0.b32.cont [2/16] 0.0, 128
    %35 = vxpose.xlu0.b32.cont [3/16] 0.0, 128
    %36 = vxpose.xlu0.b32.cont [4/16] 0.0, 128
    %37 = vxpose.xlu0.b32.cont [5/16] 0.0, 128
    %38 = vxpose.xlu0.b32.cont [6/16] 0.0, 128
    %39 = vxpose.xlu0.b32.cont [7/16] 0.0, 128
    %40 = vxpose.xlu0.b32.cont [8/16] 0.0, 128
    %41 = vxpose.xlu0.b32.cont [9/16] 0.0, 128
    %42 = vxpose.xlu0.b32.cont [10/16] 0.0, 128
    %43 = vxpose.xlu0.b32.cont [11/16] 0.0, 128
    %44 = vxpose.xlu0.b32.cont [12/16] 0.0, 128
    %45 = vxpose.xlu0.b32.cont [13/16] 0.0, 128
    %46 = vxpose.xlu0.b32.cont [14/16] 0.0, 128
    %47 = vxpose.xlu0.b32.cont [15/16] 0.0, 128
    %48 = vxpose.xlu0.b32.end [16/16] 0.0, 128
    %v49 = vpop.trf.xlu0
    %v50 = vpop.trf.xlu0
    %v51 = vpop.trf.xlu0
    %v52 = vpop.trf.xlu0
    %v53 = vpop.trf.xlu0
    %v54 = vpop.trf.xlu0
    %v55 = vpop.trf.xlu0
    %v56 = vpop.trf.xlu0
    %v57 = vpop.trf.xlu0
    %v58 = vpop.trf.xlu0
    %v59 = vpop.trf.xlu0
    %v60 = vpop.trf.xlu0
    %v61 = vpop.trf.xlu0
    %v62 = vpop.trf.xlu0
    %v63 = vpop.trf.xlu0
    %v64 = vpop.trf.xlu0
    %vm65 = vcmask 64512
    %66 = vst.msk [vmem:[#allocation3] sm:$0xff] %vm65, %v49
    %67 = vst.msk [vmem:[#allocation3 + $0x8] sm:$0xff] %vm65, %v50
    %68 = vst.msk [vmem:[#allocation3 + $0x10] sm:$0xff] %vm65, %v51
    %69 = vst.msk [vmem:[#allocation3 + $0x18] sm:$0xff] %vm65, %v52
    %70 = vst.msk [vmem:[#allocation3 + $0x20] sm:$0xff] %vm65, %v53
    %71 = vst.msk [vmem:[#allocation3 + $0x28] sm:$0xff] %vm65, %v54
    %72 = vst.msk [vmem:[#allocation3 + $0x30] sm:$0xff] %vm65, %v55
    %73 = vst.msk [vmem:[#allocation3 + $0x38] sm:$0xff] %vm65, %v56
    %74 = vst.msk [vmem:[#allocation3 + $0x40] sm:$0xff] %vm65, %v57
    %75 = vst.msk [vmem:[#allocation3 + $0x48] sm:$0xff] %vm65, %v58
    %76 = vst.msk [vmem:[#allocation3 + $0x50] sm:$0xff] %vm65, %v59
    %77 = vst.msk [vmem:[#allocation3 + $0x58] sm:$0xff] %vm65, %v60
    %78 = vst.msk [vmem:[#allocation3 + $0x60] sm:$0xff] %vm65, %v61
    %79 = vst.msk [vmem:[#allocation3 + $0x68] sm:$0xff] %vm65, %v62
    %80 = vst.msk [vmem:[#allocation3 + $0x70] sm:$0xff] %vm65, %v63
    %81 = vst.msk [vmem:[#allocation3 + $0x78] sm:$0xff] %vm65, %v64
    %v82 = vld [vmem:[#allocation2] sm:$0xff]
    %v83 = vld [vmem:[#allocation3] sm:$0xff]
    %v84 = vld [vmem:[#allocation3 + $0x8] sm:$0xff]
    %v85 = vld [vmem:[#allocation3 + $0x10] sm:$0xff]
    %v86 = vld [vmem:[#allocation3 + $0x18] sm:$0xff]
    %v87 = vld [vmem:[#allocation3 + $0x20] sm:$0xff]
    %v88 = vld [vmem:[#allocation3 + $0x28] sm:$0xff]
    %v89 = vld [vmem:[#allocation3 + $0x30] sm:$0xff]
    %v90 = vld [vmem:[#allocation3 + $0x38] sm:$0xff]
    %v91 = vld [vmem:[#allocation3 + $0x40] sm:$0xff]
    %v92 = vld [vmem:[#allocation3 + $0x48] sm:$0xff]
    %v93 = vld [vmem:[#allocation3 + $0x50] sm:$0xff]
    %v94 = vld [vmem:[#allocation3 + $0x58] sm:$0xff]
    %v95 = vld [vmem:[#allocation3 + $0x60] sm:$0xff]
    %v96 = vld [vmem:[#allocation3 + $0x68] sm:$0xff]
    %v97 = vld [vmem:[#allocation3 + $0x70] sm:$0xff]
    %v98 = vld [vmem:[#allocation3 + $0x78] sm:$0xff]
    %99 = vmatprep.subr.mxu0 0.0
    %100 = vmatpush1.msra.mxu0 %v83
    %101 = vmatprep.subr.mxu0 0.0
    %102 = vmatpush1.msra.mxu0 %v84
    %103 = vmatprep.subr.mxu0 0.0
    %104 = vmatpush1.msra.mxu0 %v85
    %105 = vmatprep.subr.mxu0 0.0
    %106 = vmatpush1.msra.mxu0 %v86
    %107 = vmatprep.subr.mxu0 0.0
    %108 = vmatpush1.msra.mxu0 %v87
    %109 = vmatprep.subr.mxu0 0.0
    %110 = vmatpush1.msra.mxu0 %v88
    %111 = vmatprep.subr.mxu0 0.0
    %112 = vmatpush1.msra.mxu0 %v89
    %113 = vmatprep.subr.mxu0 0.0
    %114 = vmatpush1.msra.mxu0 %v90
    %115 = vmatprep.subr.mxu0 0.0
    %116 = vmatpush1.msra.mxu0 %v91
    %117 = vmatprep.subr.mxu0 0.0
    %118 = vmatpush1.msra.mxu0 %v92
    %119 = vmatprep.subr.mxu0 0.0
    %120 = vmatpush1.msra.mxu0 %v93
    %121 = vmatprep.subr.mxu0 0.0
    %122 = vmatpush1.msra.mxu0 %v94
    %123 = vmatprep.subr.mxu0 0.0
    %124 = vmatpush1.msra.mxu0 %v95
    %125 = vmatprep.subr.mxu0 0.0
    %126 = vmatpush1.msra.mxu0 %v96
    %127 = vmatprep.subr.mxu0 0.0
    %128 = vmatpush1.msra.mxu0 %v97
    %129 = vmatprep.subr.mxu0 0.0
    %130 = vmatpush1.msra.mxu0 %v98
    %131 = vmatprep.subr.mxu0 0.0
    %132 = vmatpush1.msra.mxu0 0.0
    %133 = vmatprep.subr.mxu0 0.0
    %134 = vmatpush1.msra.mxu0 0.0
    %135 = vmatprep.subr.mxu0 0.0
    %136 = vmatpush1.msra.mxu0 0.0
    %137 = vmatprep.subr.mxu0 0.0
    %138 = vmatpush1.msra.mxu0 0.0
    %139 = vmatprep.subr.mxu0 0.0
    %140 = vmatpush1.msra.mxu0 0.0
    %141 = vmatprep.subr.mxu0 0.0
    %142 = vmatpush1.msra.mxu0 0.0
    %143 = vmatprep.subr.mxu0 0.0
    %144 = vmatpush1.msra.mxu0 0.0
    %145 = vmatprep.subr.mxu0 0.0
    %146 = vmatpush1.msra.mxu0 0.0
    %147 = vmatprep.subr.mxu0 0.0
    %148 = vmatpush1.msra.mxu0 0.0
    %149 = vmatprep.subr.mxu0 0.0
    %150 = vmatpush1.msra.mxu0 0.0
    %151 = vmatprep.subr.mxu0 0.0
    %152 = vmatpush1.msra.mxu0 0.0
    %153 = vmatprep.subr.mxu0 0.0
    %154 = vmatpush1.msra.mxu0 0.0
    %155 = vmatprep.subr.mxu0 0.0
    %156 = vmatpush1.msra.mxu0 0.0
    %157 = vmatprep.subr.mxu0 0.0
    %158 = vmatpush1.msra.mxu0 0.0
    %159 = vmatprep.subr.mxu0 0.0
    %160 = vmatpush1.msra.mxu0 0.0
    %161 = vmatprep.subr.mxu0 0.0
    %162 = vmatpush1.msra.mxu0 0.0
    %163 = vmatprep.mubr.f32.mxu0 0.0
    %164 = vmatmul.mubr.f32.gmra.mrb[0].mxu0 %v82
    %v165 = vpop.f32.mrb[0].mxu0
    %v166 = vadd.f32 0.0, %v165
    %v167 = vpop.f32.mrb[0].mxu0
    %168 = vdwg.mxu0
    %v169 = vsel %vm65, %v166, -inf
    %170 = vmax.xlane.f32.xlu0 %v169
    %v171 = vpop.xlane.xlu0 %170
    %v172 = vsub.f32 %v166, %v171
    %v173 = vmul.f32 %v172, 1.442695
    %v174 = vpow.pop %v173
    %v175 = vsel %vm65, %v174, 0.0
    %176 = vadd.xlane.f32.xlu0 %v175
    %v177 = vpop.xlane.xlu0 %176
    %v178 = vld [vmem:[#allocation4] sm:$0xff]
    %v180 = vsel %vm65, %v174, 0
    %182 = vmatprep.subr.mxu0 0.0
    %183 = vmatpush1.msra.mxu0 %v178
    %184 = vmatprep.subr.mxu0 0.0
    %185 = vmatpush1.msra.mxu0 0.0
    %186 = vmatprep.subr.mxu0 0.0
    %187 = vmatpush1.msra.mxu0 0.0
    %188 = vmatprep.subr.mxu0 0.0
    %189 = vmatpush1.msra.mxu0 0.0
    %190 = vmatprep.subr.mxu0 0.0
    %191 = vmatpush1.msra.mxu0 0.0
    %192 = vmatprep.subr.mxu0 0.0
    %193 = vmatpush1.msra.mxu0 0.0
    %194 = vmatprep.subr.mxu0 0.0
    %195 = vmatpush1.msra.mxu0 0.0
    %196 = vmatprep.subr.mxu0 0.0
    %197 = vmatpush1.msra.mxu0 0.0
    %198 = vmatprep.subr.mxu0 0.0
    %199 = vmatpush1.msra.mxu0 0.0
    %200 = vmatprep.subr.mxu0 0.0
    %201 = vmatpush1.msra.mxu0 0.0
    %202 = vmatprep.subr.mxu0 0.0
    %203 = vmatpush1.msra.mxu0 0.0
    %204 = vmatprep.subr.mxu0 0.0
    %205 = vmatpush1.msra.mxu0 0.0
    %206 = vmatprep.subr.mxu0 0.0
    %207 = vmatpush1.msra.mxu0 0.0
    %208 = vmatprep.subr.mxu0 0.0
    %209 = vmatpush1.msra.mxu0 0.0
    %210 = vmatprep.subr.mxu0 0.0
    %211 = vmatpush1.msra.mxu0 0.0
    %212 = vmatprep.subr.mxu0 0.0
    %213 = vmatpush1.msra.mxu0 0.0
    %214 = vmatprep.subr.mxu0 0.0
    %215 = vmatpush1.msra.mxu0 0.0
    %216 = vmatprep.subr.mxu0 0.0
    %217 = vmatpush1.msra.mxu0 0.0
    %218 = vmatprep.subr.mxu0 0.0
    %219 = vmatpush1.msra.mxu0 0.0
    %220 = vmatprep.subr.mxu0 0.0
    %221 = vmatpush1.msra.mxu0 0.0
    %222 = vmatprep.subr.mxu0 0.0
    %223 = vmatpush1.msra.mxu0 0.0
    %224 = vmatprep.subr.mxu0 0.0
    %225 = vmatpush1.msra.mxu0 0.0
    %226 = vmatprep.subr.mxu0 0.0
    %227 = vmatpush1.msra.mxu0 0.0
    %228 = vmatprep.subr.mxu0 0.0
    %229 = vmatpush1.msra.mxu0 0.0
    %230 = vmatprep.subr.mxu0 0.0
    %231 = vmatpush1.msra.mxu0 0.0
    %232 = vmatprep.subr.mxu0 0.0
    %233 = vmatpush1.msra.mxu0 0.0
    %234 = vmatprep.subr.mxu0 0.0
    %235 = vmatpush1.msra.mxu0 0.0
    %236 = vmatprep.subr.mxu0 0.0
    %237 = vmatpush1.msra.mxu0 0.0
    %238 = vmatprep.subr.mxu0 0.0
    %239 = vmatpush1.msra.mxu0 0.0
    %240 = vmatprep.subr.mxu0 0.0
    %241 = vmatpush1.msra.mxu0 0.0
    %242 = vmatprep.subr.mxu0 0.0
    %243 = vmatpush1.msra.mxu0 0.0
    %244 = vmatprep.subr.mxu0 0.0
    %245 = vmatpush1.msra.mxu0 0.0
    %246 = vmatprep.mubr.f32.mxu0 0.0
    %247 = vmatmul.mubr.f32.gmra.mrb[0].mxu0 %v180
    %v248 = vpop.f32.mrb[0].mxu0
    %v249 = vadd.f32 0.0, %v248
    %v250 = vpop.f32.mrb[0].mxu0
    %251 = vdwg.mxu0
    %v252 = vrcp.pop %v177
    %v253 = vmul.f32 %v249, %v252
    %v254 = vadd.f32 %v253, %v82
    %255 = vst [vmem:[#allocation2] sm:$0xff] %v254
    %v256 = vld [vmem:[#allocation2] sm:$0xff]
    %257 = vst [vmem:[#allocation4] sm:$0xff] %v256
    %v258 = vld [vmem:[#allocation2] sm:$0xff]
    %259 = vxpose.xlu0.b32.start [1/16] %v258, 128
    %260 = vxpose.xlu0.b32.cont [2/16] 0.0, 128
    %261 = vxpose.xlu0.b32.cont [3/16] 0.0, 128
    %262 = vxpose.xlu0.b32.cont [4/16] 0.0, 128
    %263 = vxpose.xlu0.b32.cont [5/16] 0.0, 128
    %264 = vxpose.xlu0.b32.cont [6/16] 0.0, 128
    %265 = vxpose.xlu0.b32.cont [7/16] 0.0, 128
    %266 = vxpose.xlu0.b32.cont [8/16] 0.0, 128
    %267 = vxpose.xlu0.b32.cont [9/16] 0.0, 128
    %268 = vxpose.xlu0.b32.cont [10/16] 0.0, 128
    %269 = vxpose.xlu0.b32.cont [11/16] 0.0, 128
    %270 = vxpose.xlu0.b32.cont [12/16] 0.0, 128
    %271 = vxpose.xlu0.b32.cont [13/16] 0.0, 128
    %272 = vxpose.xlu0.b32.cont [14/16] 0.0, 128
    %273 = vxpose.xlu0.b32.cont [15/16] 0.0, 128
    %274 = vxpose.xlu0.b32.end [16/16] 0.0, 128
    %v275 = vpop.trf.xlu0
    %v276 = vpop.trf.xlu0
    %v277 = vpop.trf.xlu0
    %v278 = vpop.trf.xlu0
    %v279 = vpop.trf.xlu0
    %v280 = vpop.trf.xlu0
    %v281 = vpop.trf.xlu0
    %v282 = vpop.trf.xlu0
    %v283 = vpop.trf.xlu0
    %v284 = vpop.trf.xlu0
    %v285 = vpop.trf.xlu0
    %v286 = vpop.trf.xlu0
    %v287 = vpop.trf.xlu0
    %v288 = vpop.trf.xlu0
    %v289 = vpop.trf.xlu0
    %v290 = vpop.trf.xlu0
    %291 = vst.msk [vmem:[#allocation3] sm:$0xff] %vm65, %v275
    %292 = vst.msk [vmem:[#allocation3 + $0x8] sm:$0xff] %vm65, %v276
    %293 = vst.msk [vmem:[#allocation3 + $0x10] sm:$0xff] %vm65, %v277
    %294 = vst.msk [vmem:[#allocation3 + $0x18] sm:$0xff] %vm65, %v278
    %295 = vst.msk [vmem:[#allocation3 + $0x20] sm:$0xff] %vm65, %v279
    %296 = vst.msk [vmem:[#allocation3 + $0x28] sm:$0xff] %vm65, %v280
    %297 = vst.msk [vmem:[#allocation3 + $0x30] sm:$0xff] %vm65, %v281
    %298 = vst.msk [vmem:[#allocation3 + $0x38] sm:$0xff] %vm65, %v282
    %299 = vst.msk [vmem:[#allocation3 + $0x40] sm:$0xff] %vm65, %v283
    %300 = vst.msk [vmem:[#allocation3 + $0x48] sm:$0xff] %vm65, %v284
    %301 = vst.msk [vmem:[#allocation3 + $0x50] sm:$0xff] %vm65, %v285
    %302 = vst.msk [vmem:[#allocation3 + $0x58] sm:$0xff] %vm65, %v286
    %303 = vst.msk [vmem:[#allocation3 + $0x60] sm:$0xff] %vm65, %v287
    %304 = vst.msk [vmem:[#allocation3 + $0x68] sm:$0xff] %vm65, %v288
    %305 = vst.msk [vmem:[#allocation3 + $0x70] sm:$0xff] %vm65, %v289
    %306 = vst.msk [vmem:[#allocation3 + $0x78] sm:$0xff] %vm65, %v290
    %v307 = vld [vmem:[#allocation2] sm:$0xff]
    %v308 = vld [vmem:[#allocation3] sm:$0xff]
    %v309 = vld [vmem:[#allocation3 + $0x8] sm:$0xff]
    %v310 = vld [vmem:[#allocation3 + $0x10] sm:$0xff]
    %v311 = vld [vmem:[#allocation3 + $0x18] sm:$0xff]
    %v312 = vld [vmem:[#allocation3 + $0x20] sm:$0xff]
    %v313 = vld [vmem:[#allocation3 + $0x28] sm:$0xff]
    %v314 = vld [vmem:[#allocation3 + $0x30] sm:$0xff]
    %v315 = vld [vmem:[#allocation3 + $0x38] sm:$0xff]
    %v316 = vld [vmem:[#allocation3 + $0x40] sm:$0xff]
    %v317 = vld [vmem:[#allocation3 + $0x48] sm:$0xff]
    %v318 = vld [vmem:[#allocation3 + $0x50] sm:$0xff]
    %v319 = vld [vmem:[#allocation3 + $0x58] sm:$0xff]
    %v320 = vld [vmem:[#allocation3 + $0x60] sm:$0xff]
    %v321 = vld [vmem:[#allocation3 + $0x68] sm:$0xff]
    %v322 = vld [vmem:[#allocation3 + $0x70] sm:$0xff]
    %v323 = vld [vmem:[#allocation3 + $0x78] sm:$0xff]
    %324 = vmatprep.subr.mxu0 0.0
    %325 = vmatpush1.msra.mxu0 %v308
    %326 = vmatprep.subr.mxu0 0.0
    %327 = vmatpush1.msra.mxu0 %v309
    %328 = vmatprep.subr.mxu0 0.0
    %329 = vmatpush1.msra.mxu0 %v310
    %330 = vmatprep.subr.mxu0 0.0
    %331 = vmatpush1.msra.mxu0 %v311
    %332 = vmatprep.subr.mxu0 0.0
    %333 = vmatpush1.msra.mxu0 %v312
    %334 = vmatprep.subr.mxu0 0.0
    %335 = vmatpush1.msra.mxu0 %v313
    %336 = vmatprep.subr.mxu0 0.0
    %337 = vmatpush1.msra.mxu0 %v314
    %338 = vmatprep.subr.mxu0 0.0
    %339 = vmatpush1.msra.mxu0 %v315
    %340 = vmatprep.subr.mxu0 0.0
    %341 = vmatpush1.msra.mxu0 %v316
    %342 = vmatprep.subr.mxu0 0.0
    %343 = vmatpush1.msra.mxu0 %v317
    %344 = vmatprep.subr.mxu0 0.0
    %345 = vmatpush1.msra.mxu0 %v318
    %346 = vmatprep.subr.mxu0 0.0
    %347 = vmatpush1.msra.mxu0 %v319
    %348 = vmatprep.subr.mxu0 0.0
    %349 = vmatpush1.msra.mxu0 %v320
    %350 = vmatprep.subr.mxu0 0.0
    %351 = vmatpush1.msra.mxu0 %v321
    %352 = vmatprep.subr.mxu0 0.0
    %353 = vmatpush1.msra.mxu0 %v322
    %354 = vmatprep.subr.mxu0 0.0
    %355 = vmatpush1.msra.mxu0 %v323
    %356 = vmatprep.subr.mxu0 0.0
    %357 = vmatpush1.msra.mxu0 0.0
    %358 = vmatprep.subr.mxu0 0.0
    %359 = vmatpush1.msra.mxu0 0.0
    %360 = vmatprep.subr.mxu0 0.0
    %361 = vmatpush1.msra.mxu0 0.0
    %362 = vmatprep.subr.mxu0 0.0
    %363 = vmatpush1.msra.mxu0 0.0
    %364 = vmatprep.subr.mxu0 0.0
    %365 = vmatpush1.msra.mxu0 0.0
    %366 = vmatprep.subr.mxu0 0.0
    %367 = vmatpush1.msra.mxu0 0.0
    %368 = vmatprep.subr.mxu0 0.0
    %369 = vmatpush1.msra.mxu0 0.0
    %370 = vmatprep.subr.mxu0 0.0
    %371 = vmatpush1.msra.mxu0 0.0
    %372 = vmatprep.subr.mxu0 0.0
    %373 = vmatpush1.msra.mxu0 0.0
    %374 = vmatprep.subr.mxu0 0.0
    %375 = vmatpush1.msra.mxu0 0.0
    %376 = vmatprep.subr.mxu0 0.0
    %377 = vmatpush1.msra.mxu0 0.0
    %378 = vmatprep.subr.mxu0 0.0
    %379 = vmatpush1.msra.mxu0 0.0
    %380 = vmatprep.subr.mxu0 0.0
    %381 = vmatpush1.msra.mxu0 0.0
    %382 = vmatprep.subr.mxu0 0.0
    %383 = vmatpush1.msra.mxu0 0.0
    %384 = vmatprep.subr.mxu0 0.0
    %385 = vmatpush1.msra.mxu0 0.0
    %386 = vmatprep.subr.mxu0 0.0
    %387 = vmatpush1.msra.mxu0 0.0
    %388 = vmatprep.mubr.f32.mxu0 0.0
    %389 = vmatmul.mubr.f32.gmra.mrb[0].mxu0 %v307
    %v390 = vpop.f32.mrb[0].mxu0
    %v391 = vadd.f32 0.0, %v390
    %v392 = vpop.f32.mrb[0].mxu0
    %393 = vdwg.mxu0
    %v394 = vsel %vm65, %v391, -inf
    %395 = vmax.xlane.f32.xlu0 %v394
    %v396 = vpop.xlane.xlu0 %395
    %v397 = vsub.f32 %v391, %v396
    %v398 = vmul.f32 %v397, 1.442695
    %v399 = vpow.pop %v398
    %v400 = vsel %vm65, %v399, 0.0
    %401 = vadd.xlane.f32.xlu0 %v400
    %v402 = vpop.xlane.xlu0 %401
    %v403 = vld [vmem:[#allocation4] sm:$0xff]
    %v405 = vsel %vm65, %v399, 0
    %407 = vmatprep.subr.mxu0 0.0
    %408 = vmatpush1.msra.mxu0 %v403
    %409 = vmatprep.subr.mxu0 0.0
    %410 = vmatpush1.msra.mxu0 0.0
    %411 = vmatprep.subr.mxu0 0.0
    %412 = vmatpush1.msra.mxu0 0.0
    %413 = vmatprep.subr.mxu0 0.0
    %414 = vmatpush1.msra.mxu0 0.0
    %415 = vmatprep.subr.mxu0 0.0
    %416 = vmatpush1.msra.mxu0 0.0
    %417 = vmatprep.subr.mxu0 0.0
    %418 = vmatpush1.msra.mxu0 0.0
    %419 = vmatprep.subr.mxu0 0.0
    %420 = vmatpush1.msra.mxu0 0.0
    %421 = vmatprep.subr.mxu0 0.0
    %422 = vmatpush1.msra.mxu0 0.0
    %423 = vmatprep.subr.mxu0 0.0
    %424 = vmatpush1.msra.mxu0 0.0
    %425 = vmatprep.subr.mxu0 0.0
    %426 = vmatpush1.msra.mxu0 0.0
    %427 = vmatprep.subr.mxu0 0.0
    %428 = vmatpush1.msra.mxu0 0.0
    %429 = vmatprep.subr.mxu0 0.0
    %430 = vmatpush1.msra.mxu0 0.0
    %431 = vmatprep.subr.mxu0 0.0
    %432 = vmatpush1.msra.mxu0 0.0
    %433 = vmatprep.subr.mxu0 0.0
    %434 = vmatpush1.msra.mxu0 0.0
    %435 = vmatprep.subr.mxu0 0.0
    %436 = vmatpush1.msra.mxu0 0.0
    %437 = vmatprep.subr.mxu0 0.0
    %438 = vmatpush1.msra.mxu0 0.0
    %439 = vmatprep.subr.mxu0 0.0
    %440 = vmatpush1.msra.mxu0 0.0
    %441 = vmatprep.subr.mxu0 0.0
    %442 = vmatpush1.msra.mxu0 0.0
    %443 = vmatprep.subr.mxu0 0.0
    %444 = vmatpush1.msra.mxu0 0.0
    %445 = vmatprep.subr.mxu0 0.0
    %446 = vmatpush1.msra.mxu0 0.0
    %447 = vmatprep.subr.mxu0 0.0
    %448 = vmatpush1.msra.mxu0 0.0
    %449 = vmatprep.subr.mxu0 0.0
    %450 = vmatpush1.msra.mxu0 0.0
    %451 = vmatprep.subr.mxu0 0.0
    %452 = vmatpush1.msra.mxu0 0.0
    %453 = vmatprep.subr.mxu0 0.0
    %454 = vmatpush1.msra.mxu0 0.0
    %455 = vmatprep.subr.mxu0 0.0
    %456 = vmatpush1.msra.mxu0 0.0
    %457 = vmatprep.subr.mxu0 0.0
    %458 = vmatpush1.msra.mxu0 0.0
    %459 = vmatprep.subr.mxu0 0.0
    %460 = vmatpush1.msra.mxu0 0.0
    %461 = vmatprep.subr.mxu0 0.0
    %462 = vmatpush1.msra.mxu0 0.0
    %463 = vmatprep.subr.mxu0 0.0
    %464 = vmatpush1.msra.mxu0 0.0
    %465 = vmatprep.subr.mxu0 0.0
    %466 = vmatpush1.msra.mxu0 0.0
    %467 = vmatprep.subr.mxu0 0.0
    %468 = vmatpush1.msra.mxu0 0.0
    %469 = vmatprep.subr.mxu0 0.0
    %470 = vmatpush1.msra.mxu0 0.0
    %471 = vmatprep.mubr.f32.mxu0 0.0
    %472 = vmatmul.mubr.f32.gmra.mrb[0].mxu0 %v405
    %v473 = vpop.f32.mrb[0].mxu0
    %v474 = vadd.f32 0.0, %v473
    %v475 = vpop.f32.mrb[0].mxu0
    %476 = vdwg.mxu0
    %v477 = vrcp.pop %v402
    %v478 = vmul.f32 %v474, %v477
    %v479 = vadd.f32 %v478, %v307
    %480 = vst [vmem:[#allocation2] sm:$0xff] %v479
    %v481 = vld [vmem:[#allocation2] sm:$0xff]
    %482 = vst [vmem:[#allocation4] sm:$0xff] %v481
    %v483 = vld [vmem:[#allocation2] sm:$0xff]
    %484 = vxpose.xlu0.b32.start [1/16] %v483, 128
    %485 = vxpose.xlu0.b32.cont [2/16] 0.0, 128
    %486 = vxpose.xlu0.b32.cont [3/16] 0.0, 128
    %487 = vxpose.xlu0.b32.cont [4/16] 0.0, 128
    %488 = vxpose.xlu0.b32.cont [5/16] 0.0, 128
    %489 = vxpose.xlu0.b32.cont [6/16] 0.0, 128
    %490 = vxpose.xlu0.b32.cont [7/16] 0.0, 128
    %491 = vxpose.xlu0.b32.cont [8/16] 0.0, 128
    %492 = vxpose.xlu0.b32.cont [9/16] 0.0, 128
    %493 = vxpose.xlu0.b32.cont [10/16] 0.0, 128
    %494 = vxpose.xlu0.b32.cont [11/16] 0.0, 128
    %495 = vxpose.xlu0.b32.cont [12/16] 0.0, 128
    %496 = vxpose.xlu0.b32.cont [13/16] 0.0, 128
    %497 = vxpose.xlu0.b32.cont [14/16] 0.0, 128
    %498 = vxpose.xlu0.b32.cont [15/16] 0.0, 128
    %499 = vxpose.xlu0.b32.end [16/16] 0.0, 128
    %v500 = vpop.trf.xlu0
    %v501 = vpop.trf.xlu0
    %v502 = vpop.trf.xlu0
    %v503 = vpop.trf.xlu0
    %v504 = vpop.trf.xlu0
    %v505 = vpop.trf.xlu0
    %v506 = vpop.trf.xlu0
    %v507 = vpop.trf.xlu0
    %v508 = vpop.trf.xlu0
    %v509 = vpop.trf.xlu0
    %v510 = vpop.trf.xlu0
    %v511 = vpop.trf.xlu0
    %v512 = vpop.trf.xlu0
    %v513 = vpop.trf.xlu0
    %v514 = vpop.trf.xlu0
    %v515 = vpop.trf.xlu0
    %516 = vst.msk [vmem:[#allocation3] sm:$0xff] %vm65, %v500
    %517 = vst.msk [vmem:[#allocation3 + $0x8] sm:$0xff] %vm65, %v501
    %518 = vst.msk [vmem:[#allocation3 + $0x10] sm:$0xff] %vm65, %v502
    %519 = vst.msk [vmem:[#allocation3 + $0x18] sm:$0xff] %vm65, %v503
    %520 = vst.msk [vmem:[#allocation3 + $0x20] sm:$0xff] %vm65, %v504
    %521 = vst.msk [vmem:[#allocation3 + $0x28] sm:$0xff] %vm65, %v505
    %522 = vst.msk [vmem:[#allocation3 + $0x30] sm:$0xff] %vm65, %v506
    %523 = vst.msk [vmem:[#allocation3 + $0x38] sm:$0xff] %vm65, %v507
    %524 = vst.msk [vmem:[#allocation3 + $0x40] sm:$0xff] %vm65, %v508
    %525 = vst.msk [vmem:[#allocation3 + $0x48] sm:$0xff] %vm65, %v509
    %526 = vst.msk [vmem:[#allocation3 + $0x50] sm:$0xff] %vm65, %v510
    %527 = vst.msk [vmem:[#allocation3 + $0x58] sm:$0xff] %vm65, %v511
    %528 = vst.msk [vmem:[#allocation3 + $0x60] sm:$0xff] %vm65, %v512
    %529 = vst.msk [vmem:[#allocation3 + $0x68] sm:$0xff] %vm65, %v513
    %530 = vst.msk [vmem:[#allocation3 + $0x70] sm:$0xff] %vm65, %v514
    %531 = vst.msk [vmem:[#allocation3 + $0x78] sm:$0xff] %vm65, %v515
    %v532 = vld [vmem:[#allocation2] sm:$0xff]
    %v533 = vld [vmem:[#allocation3] sm:$0xff]
    %v534 = vld [vmem:[#allocation3 + $0x8] sm:$0xff]
    %v535 = vld [vmem:[#allocation3 + $0x10] sm:$0xff]
    %v536 = vld [vmem:[#allocation3 + $0x18] sm:$0xff]
    %v537 = vld [vmem:[#allocation3 + $0x20] sm:$0xff]
    %v538 = vld [vmem:[#allocation3 + $0x28] sm:$0xff]
    %v539 = vld [vmem:[#allocation3 + $0x30] sm:$0xff]
    %v540 = vld [vmem:[#allocation3 + $0x38] sm:$0xff]
    %v541 = vld [vmem:[#allocation3 + $0x40] sm:$0xff]
    %v542 = vld [vmem:[#allocation3 + $0x48] sm:$0xff]
    %v543 = vld [vmem:[#allocation3 + $0x50] sm:$0xff]
    %v544 = vld [vmem:[#allocation3 + $0x58] sm:$0xff]
    %v545 = vld [vmem:[#allocation3 + $0x60] sm:$0xff]
    %v546 = vld [vmem:[#allocation3 + $0x68] sm:$0xff]
    %v547 = vld [vmem:[#allocation3 + $0x70] sm:$0xff]
    %v548 = vld [vmem:[#allocation3 + $0x78] sm:$0xff]
    %549 = vmatprep.subr.mxu0 0.0
    %550 = vmatpush1.msra.mxu0 %v533
    %551 = vmatprep.subr.mxu0 0.0
    %552 = vmatpush1.msra.mxu0 %v534
    %553 = vmatprep.subr.mxu0 0.0
    %554 = vmatpush1.msra.mxu0 %v535
    %555 = vmatprep.subr.mxu0 0.0
    %556 = vmatpush1.msra.mxu0 %v536
    %557 = vmatprep.subr.mxu0 0.0
    %558 = vmatpush1.msra.mxu0 %v537
    %559 = vmatprep.subr.mxu0 0.0
    %560 = vmatpush1.msra.mxu0 %v538
    %561 = vmatprep.subr.mxu0 0.0
    %562 = vmatpush1.msra.mxu0 %v539
    %563 = vmatprep.subr.mxu0 0.0
    %564 = vmatpush1.msra.mxu0 %v540
    %565 = vmatprep.subr.mxu0 0.0
    %566 = vmatpush1.msra.mxu0 %v541
    %567 = vmatprep.subr.mxu0 0.0
    %568 = vmatpush1.msra.mxu0 %v542
    %569 = vmatprep.subr.mxu0 0.0
    %570 = vmatpush1.msra.mxu0 %v543
    %571 = vmatprep.subr.mxu0 0.0
    %572 = vmatpush1.msra.mxu0 %v544
    %573 = vmatprep.subr.mxu0 0.0
    %574 = vmatpush1.msra.mxu0 %v545
    %575 = vmatprep.subr.mxu0 0.0
    %576 = vmatpush1.msra.mxu0 %v546
    %577 = vmatprep.subr.mxu0 0.0
    %578 = vmatpush1.msra.mxu0 %v547
    %579 = vmatprep.subr.mxu0 0.0
    %580 = vmatpush1.msra.mxu0 %v548
    %581 = vmatprep.subr.mxu0 0.0
    %582 = vmatpush1.msra.mxu0 0.0
    %583 = vmatprep.subr.mxu0 0.0
    %584 = vmatpush1.msra.mxu0 0.0
    %585 = vmatprep.subr.mxu0 0.0
    %586 = vmatpush1.msra.mxu0 0.0
    %587 = vmatprep.subr.mxu0 0.0
    %588 = vmatpush1.msra.mxu0 0.0
    %589 = vmatprep.subr.mxu0 0.0
    %590 = vmatpush1.msra.mxu0 0.0
    %591 = vmatprep.subr.mxu0 0.0
    %592 = vmatpush1.msra.mxu0 0.0
    %593 = vmatprep.subr.mxu0 0.0
    %594 = vmatpush1.msra.mxu0 0.0
    %595 = vmatprep.subr.mxu0 0.0
    %596 = vmatpush1.msra.mxu0 0.0
    %597 = vmatprep.subr.mxu0 0.0
    %598 = vmatpush1.msra.mxu0 0.0
    %599 = vmatprep.subr.mxu0 0.0
    %600 = vmatpush1.msra.mxu0 0.0
    %601 = vmatprep.subr.mxu0 0.0
    %602 = vmatpush1.msra.mxu0 0.0
    %603 = vmatprep.subr.mxu0 0.0
    %604 = vmatpush1.msra.mxu0 0.0
    %605 = vmatprep.subr.mxu0 0.0
    %606 = vmatpush1.msra.mxu0 0.0
    %607 = vmatprep.subr.mxu0 0.0
    %608 = vmatpush1.msra.mxu0 0.0
    %609 = vmatprep.subr.mxu0 0.0
    %610 = vmatpush1.msra.mxu0 0.0
    %611 = vmatprep.subr.mxu0 0.0
    %612 = vmatpush1.msra.mxu0 0.0
    %613 = vmatprep.mubr.f32.mxu0 0.0
    %614 = vmatmul.mubr.f32.gmra.mrb[0].mxu0 %v532
    %v615 = vpop.f32.mrb[0].mxu0
    %v616 = vadd.f32 0.0, %v615
    %v617 = vpop.f32.mrb[0].mxu0
    %618 = vdwg.mxu0
    %v619 = vsel %vm65, %v616, -inf
    %620 = vmax.xlane.f32.xlu0 %v619
    %v621 = vpop.xlane.xlu0 %620
    %v622 = vsub.f32 %v616, %v621
    %v623 = vmul.f32 %v622, 1.442695
    %v624 = vpow.pop %v623
    %v625 = vsel %vm65, %v624, 0.0
    %626 = vadd.xlane.f32.xlu0 %v625
    %v627 = vpop.xlane.xlu0 %626
    %v628 = vld [vmem:[#allocation4] sm:$0xff]
    %v630 = vsel %vm65, %v624, 0
    %632 = vmatprep.subr.mxu0 0.0
    %633 = vmatpush1.msra.mxu0 %v628
    %634 = vmatprep.subr.mxu0 0.0
    %635 = vmatpush1.msra.mxu0 0.0
    %636 = vmatprep.subr.mxu0 0.0
    %637 = vmatpush1.msra.mxu0 0.0
    %638 = vmatprep.subr.mxu0 0.0
    %639 = vmatpush1.msra.mxu0 0.0
    %640 = vmatprep.subr.mxu0 0.0
    %641 = vmatpush1.msra.mxu0 0.0
    %642 = vmatprep.subr.mxu0 0.0
    %643 = vmatpush1.msra.mxu0 0.0
    %644 = vmatprep.subr.mxu0 0.0
    %645 = vmatpush1.msra.mxu0 0.0
    %646 = vmatprep.subr.mxu0 0.0
    %647 = vmatpush1.msra.mxu0 0.0
    %648 = vmatprep.subr.mxu0 0.0
    %649 = vmatpush1.msra.mxu0 0.0
    %650 = vmatprep.subr.mxu0 0.0
    %651 = vmatpush1.msra.mxu0 0.0
    %652 = vmatprep.subr.mxu0 0.0
    %653 = vmatpush1.msra.mxu0 0.0
    %654 = vmatprep.subr.mxu0 0.0
    %655 = vmatpush1.msra.mxu0 0.0
    %656 = vmatprep.subr.mxu0 0.0
    %657 = vmatpush1.msra.mxu0 0.0
    %658 = vmatprep.subr.mxu0 0.0
    %659 = vmatpush1.msra.mxu0 0.0
    %660 = vmatprep.subr.mxu0 0.0
    %661 = vmatpush1.msra.mxu0 0.0
    %662 = vmatprep.subr.mxu0 0.0
    %663 = vmatpush1.msra.mxu0 0.0
    %664 = vmatprep.subr.mxu0 0.0
    %665 = vmatpush1.msra.mxu0 0.0
    %666 = vmatprep.subr.mxu0 0.0
    %667 = vmatpush1.msra.mxu0 0.0
    %668 = vmatprep.subr.mxu0 0.0
    %669 = vmatpush1.msra.mxu0 0.0
    %670 = vmatprep.subr.mxu0 0.0
    %671 = vmatpush1.msra.mxu0 0.0
    %672 = vmatprep.subr.mxu0 0.0
    %673 = vmatpush1.msra.mxu0 0.0
    %674 = vmatprep.subr.mxu0 0.0
    %675 = vmatpush1.msra.mxu0 0.0
    %676 = vmatprep.subr.mxu0 0.0
    %677 = vmatpush1.msra.mxu0 0.0
    %678 = vmatprep.subr.mxu0 0.0
    %679 = vmatpush1.msra.mxu0 0.0
    %680 = vmatprep.subr.mxu0 0.0
    %681 = vmatpush1.msra.mxu0 0.0
    %682 = vmatprep.subr.mxu0 0.0
    %683 = vmatpush1.msra.mxu0 0.0
    %684 = vmatprep.subr.mxu0 0.0
    %685 = vmatpush1.msra.mxu0 0.0
    %686 = vmatprep.subr.mxu0 0.0
    %687 = vmatpush1.msra.mxu0 0.0
    %688 = vmatprep.subr.mxu0 0.0
    %689 = vmatpush1.msra.mxu0 0.0
    %690 = vmatprep.subr.mxu0 0.0
    %691 = vmatpush1.msra.mxu0 0.0
    %692 = vmatprep.subr.mxu0 0.0
    %693 = vmatpush1.msra.mxu0 0.0
    %694 = vmatprep.subr.mxu0 0.0
    %695 = vmatpush1.msra.mxu0 0.0
    %696 = vmatprep.mubr.f32.mxu0 0.0
    %697 = vmatmul.mubr.f32.gmra.mrb[0].mxu0 %v630
    %v698 = vpop.f32.mrb[0].mxu0
    %v699 = vadd.f32 0.0, %v698
    %v700 = vpop.f32.mrb[0].mxu0
    %701 = vdwg.mxu0
    %v702 = vrcp.pop %v627
    %v703 = vmul.f32 %v699, %v702
    %v704 = vadd.f32 %v703, %v532
    %705 = vst [vmem:[#allocation2] sm:$0xff] %v704
    %v706 = vld [vmem:[#allocation2] sm:$0xff]
    %707 = vst [vmem:[#allocation4] sm:$0xff] %v706
    %v708 = vld [vmem:[#allocation2] sm:$0xff]
    %709 = vxpose.xlu0.b32.start [1/16] %v708, 128
    %710 = vxpose.xlu0.b32.cont [2/16] 0.0, 128
    %711 = vxpose.xlu0.b32.cont [3/16] 0.0, 128
    %712 = vxpose.xlu0.b32.cont [4/16] 0.0, 128
    %713 = vxpose.xlu0.b32.cont [5/16] 0.0, 128
    %714 = vxpose.xlu0.b32.cont [6/16] 0.0, 128
    %715 = vxpose.xlu0.b32.cont [7/16] 0.0, 128
    %716 = vxpose.xlu0.b32.cont [8/16] 0.0, 128
    %717 = vxpose.xlu0.b32.cont [9/16] 0.0, 128
    %718 = vxpose.xlu0.b32.cont [10/16] 0.0, 128
    %719 = vxpose.xlu0.b32.cont [11/16] 0.0, 128
    %720 = vxpose.xlu0.b32.cont [12/16] 0.0, 128
    %721 = vxpose.xlu0.b32.cont [13/16] 0.0, 128
    %722 = vxpose.xlu0.b32.cont [14/16] 0.0, 128
    %723 = vxpose.xlu0.b32.cont [15/16] 0.0, 128
    %724 = vxpose.xlu0.b32.end [16/16] 0.0, 128
    %v725 = vpop.trf.xlu0
    %v726 = vpop.trf.xlu0
    %v727 = vpop.trf.xlu0
    %v728 = vpop.trf.xlu0
    %v729 = vpop.trf.xlu0
    %v730 = vpop.trf.xlu0
    %v731 = vpop.trf.xlu0
    %v732 = vpop.trf.xlu0
    %v733 = vpop.trf.xlu0
    %v734 = vpop.trf.xlu0
    %v735 = vpop.trf.xlu0
    %v736 = vpop.trf.xlu0
    %v737 = vpop.trf.xlu0
    %v738 = vpop.trf.xlu0
    %v739 = vpop.trf.xlu0
    %v740 = vpop.trf.xlu0
    %741 = vst.msk [vmem:[#allocation3] sm:$0xff] %vm65, %v725
    %742 = vst.msk [vmem:[#allocation3 + $0x8] sm:$0xff] %vm65, %v726
    %743 = vst.msk [vmem:[#allocation3 + $0x10] sm:$0xff] %vm65, %v727
    %744 = vst.msk [vmem:[#allocation3 + $0x18] sm:$0xff] %vm65, %v728
    %745 = vst.msk [vmem:[#allocation3 + $0x20] sm:$0xff] %vm65, %v729
    %746 = vst.msk [vmem:[#allocation3 + $0x28] sm:$0xff] %vm65, %v730
    %747 = vst.msk [vmem:[#allocation3 + $0x30] sm:$0xff] %vm65, %v731
    %748 = vst.msk [vmem:[#allocation3 + $0x38] sm:$0xff] %vm65, %v732
    %749 = vst.msk [vmem:[#allocation3 + $0x40] sm:$0xff] %vm65, %v733
    %750 = vst.msk [vmem:[#allocation3 + $0x48] sm:$0xff] %vm65, %v734
    %751 = vst.msk [vmem:[#allocation3 + $0x50] sm:$0xff] %vm65, %v735
    %752 = vst.msk [vmem:[#allocation3 + $0x58] sm:$0xff] %vm65, %v736
    %753 = vst.msk [vmem:[#allocation3 + $0x60] sm:$0xff] %vm65, %v737
    %754 = vst.msk [vmem:[#allocation3 + $0x68] sm:$0xff] %vm65, %v738
    %755 = vst.msk [vmem:[#allocation3 + $0x70] sm:$0xff] %vm65, %v739
    %756 = vst.msk [vmem:[#allocation3 + $0x78] sm:$0xff] %vm65, %v740
    %v757 = vld [vmem:[#allocation2] sm:$0xff]
    %v758 = vld [vmem:[#allocation3] sm:$0xff]
    %v759 = vld [vmem:[#allocation3 + $0x8] sm:$0xff]
    %v760 = vld [vmem:[#allocation3 + $0x10] sm:$0xff]
    %v761 = vld [vmem:[#allocation3 + $0x18] sm:$0xff]
    %v762 = vld [vmem:[#allocation3 + $0x20] sm:$0xff]
    %v763 = vld [vmem:[#allocation3 + $0x28] sm:$0xff]
    %v764 = vld [vmem:[#allocation3 + $0x30] sm:$0xff]
    %v765 = vld [vmem:[#allocation3 + $0x38] sm:$0xff]
    %v766 = vld [vmem:[#allocation3 + $0x40] sm:$0xff]
    %v767 = vld [vmem:[#allocation3 + $0x48] sm:$0xff]
    %v768 = vld [vmem:[#allocation3 + $0x50] sm:$0xff]
    %v769 = vld [vmem:[#allocation3 + $0x58] sm:$0xff]
    %v770 = vld [vmem:[#allocation3 + $0x60] sm:$0xff]
    %v771 = vld [vmem:[#allocation3 + $0x68] sm:$0xff]
    %v772 = vld [vmem:[#allocation3 + $0x70] sm:$0xff]
    %v773 = vld [vmem:[#allocation3 + $0x78] sm:$0xff]
    %774 = vmatprep.subr.mxu0 0.0
    %775 = vmatpush1.msra.mxu0 %v758
    %776 = vmatprep.subr.mxu0 0.0
    %777 = vmatpush1.msra.mxu0 %v759
    %778 = vmatprep.subr.mxu0 0.0
    %779 = vmatpush1.msra.mxu0 %v760
    %780 = vmatprep.subr.mxu0 0.0
    %781 = vmatpush1.msra.mxu0 %v761
    %782 = vmatprep.subr.mxu0 0.0
    %783 = vmatpush1.msra.mxu0 %v762
    %784 = vmatprep.subr.mxu0 0.0
    %785 = vmatpush1.msra.mxu0 %v763
    %786 = vmatprep.subr.mxu0 0.0
    %787 = vmatpush1.msra.mxu0 %v764
    %788 = vmatprep.subr.mxu0 0.0
    %789 = vmatpush1.msra.mxu0 %v765
    %790 = vmatprep.subr.mxu0 0.0
    %791 = vmatpush1.msra.mxu0 %v766
    %792 = vmatprep.subr.mxu0 0.0
    %793 = vmatpush1.msra.mxu0 %v767
    %794 = vmatprep.subr.mxu0 0.0
    %795 = vmatpush1.msra.mxu0 %v768
    %796 = vmatprep.subr.mxu0 0.0
    %797 = vmatpush1.msra.mxu0 %v769
    %798 = vmatprep.subr.mxu0 0.0
    %799 = vmatpush1.msra.mxu0 %v770
    %800 = vmatprep.subr.mxu0 0.0
    %801 = vmatpush1.msra.mxu0 %v771
    %802 = vmatprep.subr.mxu0 0.0
    %803 = vmatpush1.msra.mxu0 %v772
    %804 = vmatprep.subr.mxu0 0.0
    %805 = vmatpush1.msra.mxu0 %v773
    %806 = vmatprep.subr.mxu0 0.0
    %807 = vmatpush1.msra.mxu0 0.0
    %808 = vmatprep.subr.mxu0 0.0
    %809 = vmatpush1.msra.mxu0 0.0
    %810 = vmatprep.subr.mxu0 0.0
    %811 = vmatpush1.msra.mxu0 0.0
    %812 = vmatprep.subr.mxu0 0.0
    %813 = vmatpush1.msra.mxu0 0.0
    %814 = vmatprep.subr.mxu0 0.0
    %815 = vmatpush1.msra.mxu0 0.0
    %816 = vmatprep.subr.mxu0 0.0
    %817 = vmatpush1.msra.mxu0 0.0
    %818 = vmatprep.subr.mxu0 0.0
    %819 = vmatpush1.msra.mxu0 0.0
    %820 = vmatprep.subr.mxu0 0.0
    %821 = vmatpush1.msra.mxu0 0.0
    %822 = vmatprep.subr.mxu0 0.0
    %823 = vmatpush1.msra.mxu0 0.0
    %824 = vmatprep.subr.mxu0 0.0
    %825 = vmatpush1.msra.mxu0 0.0
    %826 = vmatprep.subr.mxu0 0.0
    %827 = vmatpush1.msra.mxu0 0.0
    %828 = vmatprep.subr.mxu0 0.0
    %829 = vmatpush1.msra.mxu0 0.0
    %830 = vmatprep.subr.mxu0 0.0
    %831 = vmatpush1.msra.mxu0 0.0
    %832 = vmatprep.subr.mxu0 0.0
    %833 = vmatpush1.msra.mxu0 0.0
    %834 = vmatprep.subr.mxu0 0.0
    %835 = vmatpush1.msra.mxu0 0.0
    %836 = vmatprep.subr.mxu0 0.0
    %837 = vmatpush1.msra.mxu0 0.0
    %838 = vmatprep.mubr.f32.mxu0 0.0
    %839 = vmatmul.mubr.f32.gmra.mrb[0].mxu0 %v757
    %v840 = vpop.f32.mrb[0].mxu0
    %v841 = vadd.f32 0.0, %v840
    %v842 = vpop.f32.mrb[0].mxu0
    %843 = vdwg.mxu0
    %v844 = vsel %vm65, %v841, -inf
    %845 = vmax.xlane.f32.xlu0 %v844
    %v846 = vpop.xlane.xlu0 %845
    %v847 = vsub.f32 %v841, %v846
    %v848 = vmul.f32 %v847, 1.442695
    %v849 = vpow.pop %v848
    %v850 = vsel %vm65, %v849, 0.0
    %851 = vadd.xlane.f32.xlu0 %v850
    %v852 = vpop.xlane.xlu0 %851
    %v853 = vld [vmem:[#allocation4] sm:$0xff]
    %v855 = vsel %vm65, %v849, 0
    %857 = vmatprep.subr.mxu0 0.0
    %858 = vmatpush1.msra.mxu0 %v853
    %859 = vmatprep.subr.mxu0 0.0
    %860 = vmatpush1.msra.mxu0 0.0
    %861 = vmatprep.subr.mxu0 0.0
    %862 = vmatpush1.msra.mxu0 0.0
    %863 = vmatprep.subr.mxu0 0.0
    %864 = vmatpush1.msra.mxu0 0.0
    %865 = vmatprep.subr.mxu0 0.0
    %866 = vmatpush1.msra.mxu0 0.0
    %867 = vmatprep.subr.mxu0 0.0
    %868 = vmatpush1.msra.mxu0 0.0
    %869 = vmatprep.subr.mxu0 0.0
    %870 = vmatpush1.msra.mxu0 0.0
    %871 = vmatprep.subr.mxu0 0.0
    %872 = vmatpush1.msra.mxu0 0.0
    %873 = vmatprep.subr.mxu0 0.0
    %874 = vmatpush1.msra.mxu0 0.0
    %875 = vmatprep.subr.mxu0 0.0
    %876 = vmatpush1.msra.mxu0 0.0
    %877 = vmatprep.subr.mxu0 0.0
    %878 = vmatpush1.msra.mxu0 0.0
    %879 = vmatprep.subr.mxu0 0.0
    %880 = vmatpush1.msra.mxu0 0.0
    %881 = vmatprep.subr.mxu0 0.0
    %882 = vmatpush1.msra.mxu0 0.0
    %883 = vmatprep.subr.mxu0 0.0
    %884 = vmatpush1.msra.mxu0 0.0
    %885 = vmatprep.subr.mxu0 0.0
    %886 = vmatpush1.msra.mxu0 0.0
    %887 = vmatprep.subr.mxu0 0.0
    %888 = vmatpush1.msra.mxu0 0.0
    %889 = vmatprep.subr.mxu0 0.0
    %890 = vmatpush1.msra.mxu0 0.0
    %891 = vmatprep.subr.mxu0 0.0
    %892 = vmatpush1.msra.mxu0 0.0
    %893 = vmatprep.subr.mxu0 0.0
    %894 = vmatpush1.msra.mxu0 0.0
    %895 = vmatprep.subr.mxu0 0.0
    %896 = vmatpush1.msra.mxu0 0.0
    %897 = vmatprep.subr.mxu0 0.0
    %898 = vmatpush1.msra.mxu0 0.0
    %899 = vmatprep.subr.mxu0 0.0
    %900 = vmatpush1.msra.mxu0 0.0
    %901 = vmatprep.subr.mxu0 0.0
    %902 = vmatpush1.msra.mxu0 0.0
    %903 = vmatprep.subr.mxu0 0.0
    %904 = vmatpush1.msra.mxu0 0.0
    %905 = vmatprep.subr.mxu0 0.0
    %906 = vmatpush1.msra.mxu0 0.0
    %907 = vmatprep.subr.mxu0 0.0
    %908 = vmatpush1.msra.mxu0 0.0
    %909 = vmatprep.subr.mxu0 0.0
    %910 = vmatpush1.msra.mxu0 0.0
    %911 = vmatprep.subr.mxu0 0.0
    %912 = vmatpush1.msra.mxu0 0.0
    %913 = vmatprep.subr.mxu0 0.0
    %914 = vmatpush1.msra.mxu0 0.0
    %915 = vmatprep.subr.mxu0 0.0
    %916 = vmatpush1.msra.mxu0 0.0
    %917 = vmatprep.subr.mxu0 0.0
    %918 = vmatpush1.msra.mxu0 0.0
    %919 = vmatprep.subr.mxu0 0.0
    %920 = vmatpush1.msra.mxu0 0.0
    %921 = vmatprep.mubr.f32.mxu0 0.0
    %922 = vmatmul.mubr.f32.gmra.mrb[0].mxu0 %v855
    %v923 = vpop.f32.mrb[0].mxu0
    %v924 = vadd.f32 0.0, %v923
    %v925 = vpop.f32.mrb[0].mxu0
    %926 = vdwg.mxu0
    %v927 = vrcp.pop %v852
    %v928 = vmul.f32 %v924, %v927
    %v929 = vadd.f32 %v928, %v757
    %930 = vst [vmem:[#allocation2] sm:$0xff] %v929
    %v931 = vld [vmem:[#allocation2] sm:$0xff]
    %932 = vst [vmem:[#allocation4] sm:$0xff] %v931
    %v933 = vld [vmem:[#allocation2] sm:$0xff]
    %934 = vxpose.xlu0.b32.start [1/16] %v933, 128
    %935 = vxpose.xlu0.b32.cont [2/16] 0.0, 128
    %936 = vxpose.xlu0.b32.cont [3/16] 0.0, 128
    %937 = vxpose.xlu0.b32.cont [4/16] 0.0, 128
    %938 = vxpose.xlu0.b32.cont [5/16] 0.0, 128
    %939 = vxpose.xlu0.b32.cont [6/16] 0.0, 128
    %940 = vxpose.xlu0.b32.cont [7/16] 0.0, 128
    %941 = vxpose.xlu0.b32.cont [8/16] 0.0, 128
    %942 = vxpose.xlu0.b32.cont [9/16] 0.0, 128
    %943 = vxpose.xlu0.b32.cont [10/16] 0.0, 128
    %944 = vxpose.xlu0.b32.cont [11/16] 0.0, 128
    %945 = vxpose.xlu0.b32.cont [12/16] 0.0, 128
    %946 = vxpose.xlu0.b32.cont [13/16] 0.0, 128
    %947 = vxpose.xlu0.b32.cont [14/16] 0.0, 128
    %948 = vxpose.xlu0.b32.cont [15/16] 0.0, 128
    %949 = vxpose.xlu0.b32.end [16/16] 0.0, 128
    %v950 = vpop.trf.xlu0
    %v951 = vpop.trf.xlu0
    %v952 = vpop.trf.xlu0
    %v953 = vpop.trf.xlu0
    %v954 = vpop.trf.xlu0
    %v955 = vpop.trf.xlu0
    %v956 = vpop.trf.xlu0
    %v957 = vpop.trf.xlu0
    %v958 = vpop.trf.xlu0
    %v959 = vpop.trf.xlu0
    %v960 = vpop.trf.xlu0
    %v961 = vpop.trf.xlu0
    %v962 = vpop.trf.xlu0
    %v963 = vpop.trf.xlu0
    %v964 = vpop.trf.xlu0
    %v965 = vpop.trf.xlu0
    %966 = vst.msk [vmem:[#allocation3] sm:$0xff] %vm65, %v950
    %967 = vst.msk [vmem:[#allocation3 + $0x8] sm:$0xff] %vm65, %v951
    %968 = vst.msk [vmem:[#allocation3 + $0x10] sm:$0xff] %vm65, %v952
    %969 = vst.msk [vmem:[#allocation3 + $0x18] sm:$0xff] %vm65, %v953
    %970 = vst.msk [vmem:[#allocation3 + $0x20] sm:$0xff] %vm65, %v954
    %971 = vst.msk [vmem:[#allocation3 + $0x28] sm:$0xff] %vm65, %v955
    %972 = vst.msk [vmem:[#allocation3 + $0x30] sm:$0xff] %vm65, %v956
    %973 = vst.msk [vmem:[#allocation3 + $0x38] sm:$0xff] %vm65, %v957
    %974 = vst.msk [vmem:[#allocation3 + $0x40] sm:$0xff] %vm65, %v958
    %975 = vst.msk [vmem:[#allocation3 + $0x48] sm:$0xff] %vm65, %v959
    %976 = vst.msk [vmem:[#allocation3 + $0x50] sm:$0xff] %vm65, %v960
    %977 = vst.msk [vmem:[#allocation3 + $0x58] sm:$0xff] %vm65, %v961
    %978 = vst.msk [vmem:[#allocation3 + $0x60] sm:$0xff] %vm65, %v962
    %979 = vst.msk [vmem:[#allocation3 + $0x68] sm:$0xff] %vm65, %v963
    %980 = vst.msk [vmem:[#allocation3 + $0x70] sm:$0xff] %vm65, %v964
    %981 = vst.msk [vmem:[#allocation3 + $0x78] sm:$0xff] %vm65, %v965
    %v982 = vld [vmem:[#allocation2] sm:$0xff]
    %v983 = vld [vmem:[#allocation3] sm:$0xff]
    %v984 = vld [vmem:[#allocation3 + $0x8] sm:$0xff]
    %v985 = vld [vmem:[#allocation3 + $0x10] sm:$0xff]
    %v986 = vld [vmem:[#allocation3 + $0x18] sm:$0xff]
    %v987 = vld [vmem:[#allocation3 + $0x20] sm:$0xff]
    %v988 = vld [vmem:[#allocation3 + $0x28] sm:$0xff]
    %v989 = vld [vmem:[#allocation3 + $0x30] sm:$0xff]
    %v990 = vld [vmem:[#allocation3 + $0x38] sm:$0xff]
    %v991 = vld [vmem:[#allocation3 + $0x40] sm:$0xff]
    %v992 = vld [vmem:[#allocation3 + $0x48] sm:$0xff]
    %v993 = vld [vmem:[#allocation3 + $0x50] sm:$0xff]
    %v994 = vld [vmem:[#allocation3 + $0x58] sm:$0xff]
    %v995 = vld [vmem:[#allocation3 + $0x60] sm:$0xff]
    %v996 = vld [vmem:[#allocation3 + $0x68] sm:$0xff]
    %v997 = vld [vmem:[#allocation3 + $0x70] sm:$0xff]
    %v998 = vld [vmem:[#allocation3 + $0x78] sm:$0xff]
    %999 = vmatprep.subr.mxu0 0.0
    %1000 = vmatpush1.msra.mxu0 %v983
    %1001 = vmatprep.subr.mxu0 0.0
    %1002 = vmatpush1.msra.mxu0 %v984
    %1003 = vmatprep.subr.mxu0 0.0
    %1004 = vmatpush1.msra.mxu0 %v985
    %1005 = vmatprep.subr.mxu0 0.0
    %1006 = vmatpush1.msra.mxu0 %v986
    %1007 = vmatprep.subr.mxu0 0.0
    %1008 = vmatpush1.msra.mxu0 %v987
    %1009 = vmatprep.subr.mxu0 0.0
    %1010 = vmatpush1.msra.mxu0 %v988
    %1011 = vmatprep.subr.mxu0 0.0
    %1012 = vmatpush1.msra.mxu0 %v989
    %1013 = vmatprep.subr.mxu0 0.0
    %1014 = vmatpush1.msra.mxu0 %v990
    %1015 = vmatprep.subr.mxu0 0.0
    %1016 = vmatpush1.msra.mxu0 %v991
    %1017 = vmatprep.subr.mxu0 0.0
    %1018 = vmatpush1.msra.mxu0 %v992
    %1019 = vmatprep.subr.mxu0 0.0
    %1020 = vmatpush1.msra.mxu0 %v993
    %1021 = vmatprep.subr.mxu0 0.0
    %1022 = vmatpush1.msra.mxu0 %v994
    %1023 = vmatprep.subr.mxu0 0.0
    %1024 = vmatpush1.msra.mxu0 %v995
    %1025 = vmatprep.subr.mxu0 0.0
    %1026 = vmatpush1.msra.mxu0 %v996
    %1027 = vmatprep.subr.mxu0 0.0
    %1028 = vmatpush1.msra.mxu0 %v997
    %1029 = vmatprep.subr.mxu0 0.0
    %1030 = vmatpush1.msra.mxu0 %v998
    %1031 = vmatprep.subr.mxu0 0.0
    %1032 = vmatpush1.msra.mxu0 0.0
    %1033 = vmatprep.subr.mxu0 0.0
    %1034 = vmatpush1.msra.mxu0 0.0
    %1035 = vmatprep.subr.mxu0 0.0
    %1036 = vmatpush1.msra.mxu0 0.0
    %1037 = vmatprep.subr.mxu0 0.0
    %1038 = vmatpush1.msra.mxu0 0.0
    %1039 = vmatprep.subr.mxu0 0.0
    %1040 = vmatpush1.msra.mxu0 0.0
    %1041 = vmatprep.subr.mxu0 0.0
    %1042 = vmatpush1.msra.mxu0 0.0
    %1043 = vmatprep.subr.mxu0 0.0
    %1044 = vmatpush1.msra.mxu0 0.0
    %1045 = vmatprep.subr.mxu0 0.0
    %1046 = vmatpush1.msra.mxu0 0.0
    %1047 = vmatprep.subr.mxu0 0.0
    %1048 = vmatpush1.msra.mxu0 0.0
    %1049 = vmatprep.subr.mxu0 0.0
    %1050 = vmatpush1.msra.mxu0 0.0
    %1051 = vmatprep.subr.mxu0 0.0
    %1052 = vmatpush1.msra.mxu0 0.0
    %1053 = vmatprep.subr.mxu0 0.0
    %1054 = vmatpush1.msra.mxu0 0.0
    %1055 = vmatprep.subr.mxu0 0.0
    %1056 = vmatpush1.msra.mxu0 0.0
    %1057 = vmatprep.subr.mxu0 0.0
    %1058 = vmatpush1.msra.mxu0 0.0
    %1059 = vmatprep.subr.mxu0 0.0
    %1060 = vmatpush1.msra.mxu0 0.0
    %1061 = vmatprep.subr.mxu0 0.0
    %1062 = vmatpush1.msra.mxu0 0.0
    %1063 = vmatprep.mubr.f32.mxu0 0.0
    %1064 = vmatmul.mubr.f32.gmra.mrb[0].mxu0 %v982
    %v1065 = vpop.f32.mrb[0].mxu0
    %v1066 = vadd.f32 0.0, %v1065
    %v1067 = vpop.f32.mrb[0].mxu0
    %1068 = vdwg.mxu0
    %v1069 = vsel %vm65, %v1066, -inf
    %1070 = vmax.xlane.f32.xlu0 %v1069
    %v1071 = vpop.xlane.xlu0 %1070
    %v1072 = vsub.f32 %v1066, %v1071
    %v1073 = vmul.f32 %v1072, 1.442695
    %v1074 = vpow.pop %v1073
    %v1075 = vsel %vm65, %v1074, 0.0
    %1076 = vadd.xlane.f32.xlu0 %v1075
    %v1077 = vpop.xlane.xlu0 %1076
    %v1078 = vld [vmem:[#allocation4] sm:$0xff]
    %v1080 = vsel %vm65, %v1074, 0
    %1082 = vmatprep.subr.mxu0 0.0
    %1083 = vmatpush1.msra.mxu0 %v1078
    %1084 = vmatprep.subr.mxu0 0.0
    %1085 = vmatpush1.msra.mxu0 0.0
    %1086 = vmatprep.subr.mxu0 0.0
    %1087 = vmatpush1.msra.mxu0 0.0
    %1088 = vmatprep.subr.mxu0 0.0
    %1089 = vmatpush1.msra.mxu0 0.0
    %1090 = vmatprep.subr.mxu0 0.0
    %1091 = vmatpush1.msra.mxu0 0.0
    %1092 = vmatprep.subr.mxu0 0.0
    %1093 = vmatpush1.msra.mxu0 0.0
    %1094 = vmatprep.subr.mxu0 0.0
    %1095 = vmatpush1.msra.mxu0 0.0
    %1096 = vmatprep.subr.mxu0 0.0
    %1097 = vmatpush1.msra.mxu0 0.0
    %1098 = vmatprep.subr.mxu0 0.0
    %1099 = vmatpush1.msra.mxu0 0.0
    %1100 = vmatprep.subr.mxu0 0.0
    %1101 = vmatpush1.msra.mxu0 0.0
    %1102 = vmatprep.subr.mxu0 0.0
    %1103 = vmatpush1.msra.mxu0 0.0
    %1104 = vmatprep.subr.mxu0 0.0
    %1105 = vmatpush1.msra.mxu0 0.0
    %1106 = vmatprep.subr.mxu0 0.0
    %1107 = vmatpush1.msra.mxu0 0.0
    %1108 = vmatprep.subr.mxu0 0.0
    %1109 = vmatpush1.msra.mxu0 0.0
    %1110 = vmatprep.subr.mxu0 0.0
    %1111 = vmatpush1.msra.mxu0 0.0
    %1112 = vmatprep.subr.mxu0 0.0
    %1113 = vmatpush1.msra.mxu0 0.0
    %1114 = vmatprep.subr.mxu0 0.0
    %1115 = vmatpush1.msra.mxu0 0.0
    %1116 = vmatprep.subr.mxu0 0.0
    %1117 = vmatpush1.msra.mxu0 0.0
    %1118 = vmatprep.subr.mxu0 0.0
    %1119 = vmatpush1.msra.mxu0 0.0
    %1120 = vmatprep.subr.mxu0 0.0
    %1121 = vmatpush1.msra.mxu0 0.0
    %1122 = vmatprep.subr.mxu0 0.0
    %1123 = vmatpush1.msra.mxu0 0.0
    %1124 = vmatprep.subr.mxu0 0.0
    %1125 = vmatpush1.msra.mxu0 0.0
    %1126 = vmatprep.subr.mxu0 0.0
    %1127 = vmatpush1.msra.mxu0 0.0
    %1128 = vmatprep.subr.mxu0 0.0
    %1129 = vmatpush1.msra.mxu0 0.0
    %1130 = vmatprep.subr.mxu0 0.0
    %1131 = vmatpush1.msra.mxu0 0.0
    %1132 = vmatprep.subr.mxu0 0.0
    %1133 = vmatpush1.msra.mxu0 0.0
    %1134 = vmatprep.subr.mxu0 0.0
    %1135 = vmatpush1.msra.mxu0 0.0
    %1136 = vmatprep.subr.mxu0 0.0
    %1137 = vmatpush1.msra.mxu0 0.0
    %1138 = vmatprep.subr.mxu0 0.0
    %1139 = vmatpush1.msra.mxu0 0.0
    %1140 = vmatprep.subr.mxu0 0.0
    %1141 = vmatpush1.msra.mxu0 0.0
    %1142 = vmatprep.subr.mxu0 0.0
    %1143 = vmatpush1.msra.mxu0 0.0
    %1144 = vmatprep.subr.mxu0 0.0
    %1145 = vmatpush1.msra.mxu0 0.0
    %1146 = vmatprep.mubr.f32.mxu0 0.0
    %1147 = vmatmul.mubr.f32.gmra.mrb[0].mxu0 %v1080
    %v1148 = vpop.f32.mrb[0].mxu0
    %v1149 = vadd.f32 0.0, %v1148
    %v1150 = vpop.f32.mrb[0].mxu0
    %1151 = vdwg.mxu0
    %v1152 = vrcp.pop %v1077
    %v1153 = vmul.f32 %v1149, %v1152
    %v1154 = vadd.f32 %v1153, %v982
    %1155 = vst [vmem:[#allocation2] sm:$0xff] %v1154
    %v1156 = vld [vmem:[#allocation2] sm:$0xff]
    %1157 = vst [vmem:[#allocation4] sm:$0xff] %v1156
    %v1158 = vld [vmem:[#allocation2] sm:$0xff]
    %1159 = vxpose.xlu0.b32.start [1/16] %v1158, 128
    %1160 = vxpose.xlu0.b32.cont [2/16] 0.0, 128
    %1161 = vxpose.xlu0.b32.cont [3/16] 0.0, 128
    %1162 = vxpose.xlu0.b32.cont [4/16] 0.0, 128
    %1163 = vxpose.xlu0.b32.cont [5/16] 0.0, 128
    %1164 = vxpose.xlu0.b32.cont [6/16] 0.0, 128
    %1165 = vxpose.xlu0.b32.cont [7/16] 0.0, 128
    %1166 = vxpose.xlu0.b32.cont [8/16] 0.0, 128
    %1167 = vxpose.xlu0.b32.cont [9/16] 0.0, 128
    %1168 = vxpose.xlu0.b32.cont [10/16] 0.0, 128
    %1169 = vxpose.xlu0.b32.cont [11/16] 0.0, 128
    %1170 = vxpose.xlu0.b32.cont [12/16] 0.0, 128
    %1171 = vxpose.xlu0.b32.cont [13/16] 0.0, 128
    %1172 = vxpose.xlu0.b32.cont [14/16] 0.0, 128
    %1173 = vxpose.xlu0.b32.cont [15/16] 0.0, 128
    %1174 = vxpose.xlu0.b32.end [16/16] 0.0, 128
    %v1175 = vpop.trf.xlu0
    %v1176 = vpop.trf.xlu0
    %v1177 = vpop.trf.xlu0
    %v1178 = vpop.trf.xlu0
    %v1179 = vpop.trf.xlu0
    %v1180 = vpop.trf.xlu0
    %v1181 = vpop.trf.xlu0
    %v1182 = vpop.trf.xlu0
    %v1183 = vpop.trf.xlu0
    %v1184 = vpop.trf.xlu0
    %v1185 = vpop.trf.xlu0
    %v1186 = vpop.trf.xlu0
    %v1187 = vpop.trf.xlu0
    %v1188 = vpop.trf.xlu0
    %v1189 = vpop.trf.xlu0
    %v1190 = vpop.trf.xlu0
    %1191 = vst.msk [vmem:[#allocation3] sm:$0xff] %vm65, %v1175
    %1192 = vst.msk [vmem:[#allocation3 + $0x8] sm:$0xff] %vm65, %v1176
    %1193 = vst.msk [vmem:[#allocation3 + $0x10] sm:$0xff] %vm65, %v1177
    %1194 = vst.msk [vmem:[#allocation3 + $0x18] sm:$0xff] %vm65, %v1178
    %1195 = vst.msk [vmem:[#allocation3 + $0x20] sm:$0xff] %vm65, %v1179
    %1196 = vst.msk [vmem:[#allocation3 + $0x28] sm:$0xff] %vm65, %v1180
    %1197 = vst.msk [vmem:[#allocation3 + $0x30] sm:$0xff] %vm65, %v1181
    %1198 = vst.msk [vmem:[#allocation3 + $0x38] sm:$0xff] %vm65, %v1182
    %1199 = vst.msk [vmem:[#allocation3 + $0x40] sm:$0xff] %vm65, %v1183
    %1200 = vst.msk [vmem:[#allocation3 + $0x48] sm:$0xff] %vm65, %v1184
    %1201 = vst.msk [vmem:[#allocation3 + $0x50] sm:$0xff] %vm65, %v1185
    %1202 = vst.msk [vmem:[#allocation3 + $0x58] sm:$0xff] %vm65, %v1186
    %1203 = vst.msk [vmem:[#allocation3 + $0x60] sm:$0xff] %vm65, %v1187
    %1204 = vst.msk [vmem:[#allocation3 + $0x68] sm:$0xff] %vm65, %v1188
    %1205 = vst.msk [vmem:[#allocation3 + $0x70] sm:$0xff] %vm65, %v1189
    %1206 = vst.msk [vmem:[#allocation3 + $0x78] sm:$0xff] %vm65, %v1190
    %v1207 = vld [vmem:[#allocation2] sm:$0xff]
    %v1208 = vld [vmem:[#allocation3] sm:$0xff]
    %v1209 = vld [vmem:[#allocation3 + $0x8] sm:$0xff]
    %v1210 = vld [vmem:[#allocation3 + $0x10] sm:$0xff]
    %v1211 = vld [vmem:[#allocation3 + $0x18] sm:$0xff]
    %v1212 = vld [vmem:[#allocation3 + $0x20] sm:$0xff]
    %v1213 = vld [vmem:[#allocation3 + $0x28] sm:$0xff]
    %v1214 = vld [vmem:[#allocation3 + $0x30] sm:$0xff]
    %v1215 = vld [vmem:[#allocation3 + $0x38] sm:$0xff]
    %v1216 = vld [vmem:[#allocation3 + $0x40] sm:$0xff]
    %v1217 = vld [vmem:[#allocation3 + $0x48] sm:$0xff]
    %v1218 = vld [vmem:[#allocation3 + $0x50] sm:$0xff]
    %v1219 = vld [vmem:[#allocation3 + $0x58] sm:$0xff]
    %v1220 = vld [vmem:[#allocation3 + $0x60] sm:$0xff]
    %v1221 = vld [vmem:[#allocation3 + $0x68] sm:$0xff]
    %v1222 = vld [vmem:[#allocation3 + $0x70] sm:$0xff]
    %v1223 = vld [vmem:[#allocation3 + $0x78] sm:$0xff]
    %1224 = vmatprep.subr.mxu0 0.0
    %1225 = vmatpush1.msra.mxu0 %v1208
    %1226 = vmatprep.subr.mxu0 0.0
    %1227 = vmatpush1.msra.mxu0 %v1209
    %1228 = vmatprep.subr.mxu0 0.0
    %1229 = vmatpush1.msra.mxu0 %v1210
    %1230 = vmatprep.subr.mxu0 0.0
    %1231 = vmatpush1.msra.mxu0 %v1211
    %1232 = vmatprep.subr.mxu0 0.0
    %1233 = vmatpush1.msra.mxu0 %v1212
    %1234 = vmatprep.subr.mxu0 0.0
    %1235 = vmatpush1.msra.mxu0 %v1213
    %1236 = vmatprep.subr.mxu0 0.0
    %1237 = vmatpush1.msra.mxu0 %v1214
    %1238 = vmatprep.subr.mxu0 0.0
    %1239 = vmatpush1.msra.mxu0 %v1215
    %1240 = vmatprep.subr.mxu0 0.0
    %1241 = vmatpush1.msra.mxu0 %v1216
    %1242 = vmatprep.subr.mxu0 0.0
    %1243 = vmatpush1.msra.mxu0 %v1217
    %1244 = vmatprep.subr.mxu0 0.0
    %1245 = vmatpush1.msra.mxu0 %v1218
    %1246 = vmatprep.subr.mxu0 0.0
    %1247 = vmatpush1.msra.mxu0 %v1219
    %1248 = vmatprep.subr.mxu0 0.0
    %1249 = vmatpush1.msra.mxu0 %v1220
    %1250 = vmatprep.subr.mxu0 0.0
    %1251 = vmatpush1.msra.mxu0 %v1221
    %1252 = vmatprep.subr.mxu0 0.0
    %1253 = vmatpush1.msra.mxu0 %v1222
    %1254 = vmatprep.subr.mxu0 0.0
    %1255 = vmatpush1.msra.mxu0 %v1223
    %1256 = vmatprep.subr.mxu0 0.0
    %1257 = vmatpush1.msra.mxu0 0.0
    %1258 = vmatprep.subr.mxu0 0.0
    %1259 = vmatpush1.msra.mxu0 0.0
    %1260 = vmatprep.subr.mxu0 0.0
    %1261 = vmatpush1.msra.mxu0 0.0
    %1262 = vmatprep.subr.mxu0 0.0
    %1263 = vmatpush1.msra.mxu0 0.0
    %1264 = vmatprep.subr.mxu0 0.0
    %1265 = vmatpush1.msra.mxu0 0.0
    %1266 = vmatprep.subr.mxu0 0.0
    %1267 = vmatpush1.msra.mxu0 0.0
    %1268 = vmatprep.subr.mxu0 0.0
    %1269 = vmatpush1.msra.mxu0 0.0
    %1270 = vmatprep.subr.mxu0 0.0
    %1271 = vmatpush1.msra.mxu0 0.0
    %1272 = vmatprep.subr.mxu0 0.0
    %1273 = vmatpush1.msra.mxu0 0.0
    %1274 = vmatprep.subr.mxu0 0.0
    %1275 = vmatpush1.msra.mxu0 0.0
    %1276 = vmatprep.subr.mxu0 0.0
    %1277 = vmatpush1.msra.mxu0 0.0
    %1278 = vmatprep.subr.mxu0 0.0
    %1279 = vmatpush1.msra.mxu0 0.0
    %1280 = vmatprep.subr.mxu0 0.0
    %1281 = vmatpush1.msra.mxu0 0.0
    %1282 = vmatprep.subr.mxu0 0.0
    %1283 = vmatpush1.msra.mxu0 0.0
    %1284 = vmatprep.subr.mxu0 0.0
    %1285 = vmatpush1.msra.mxu0 0.0
    %1286 = vmatprep.subr.mxu0 0.0
    %1287 = vmatpush1.msra.mxu0 0.0
    %1288 = vmatprep.mubr.f32.mxu0 0.0
    %1289 = vmatmul.mubr.f32.gmra.mrb[0].mxu0 %v1207
    %v1290 = vpop.f32.mrb[0].mxu0
    %v1291 = vadd.f32 0.0, %v1290
    %v1292 = vpop.f32.mrb[0].mxu0
    %1293 = vdwg.mxu0
    %v1294 = vsel %vm65, %v1291, -inf
    %1295 = vmax.xlane.f32.xlu0 %v1294
    %v1296 = vpop.xlane.xlu0 %1295
    %v1297 = vsub.f32 %v1291, %v1296
    %v1298 = vmul.f32 %v1297, 1.442695
    %v1299 = vpow.pop %v1298
    %v1300 = vsel %vm65, %v1299, 0.0
    %1301 = vadd.xlane.f32.xlu0 %v1300
    %v1302 = vpop.xlane.xlu0 %1301
    %v1303 = vld [vmem:[#allocation4] sm:$0xff]
    %v1305 = vsel %vm65, %v1299, 0
    %1307 = vmatprep.subr.mxu0 0.0
    %1308 = vmatpush1.msra.mxu0 %v1303
    %1309 = vmatprep.subr.mxu0 0.0
    %1310 = vmatpush1.msra.mxu0 0.0
    %1311 = vmatprep.subr.mxu0 0.0
    %1312 = vmatpush1.msra.mxu0 0.0
    %1313 = vmatprep.subr.mxu0 0.0
    %1314 = vmatpush1.msra.mxu0 0.0
    %1315 = vmatprep.subr.mxu0 0.0
    %1316 = vmatpush1.msra.mxu0 0.0
    %1317 = vmatprep.subr.mxu0 0.0
    %1318 = vmatpush1.msra.mxu0 0.0
    %1319 = vmatprep.subr.mxu0 0.0
    %1320 = vmatpush1.msra.mxu0 0.0
    %1321 = vmatprep.subr.mxu0 0.0
    %1322 = vmatpush1.msra.mxu0 0.0
    %1323 = vmatprep.subr.mxu0 0.0
    %1324 = vmatpush1.msra.mxu0 0.0
    %1325 = vmatprep.subr.mxu0 0.0
    %1326 = vmatpush1.msra.mxu0 0.0
    %1327 = vmatprep.subr.mxu0 0.0
    %1328 = vmatpush1.msra.mxu0 0.0
    %1329 = vmatprep.subr.mxu0 0.0
    %1330 = vmatpush1.msra.mxu0 0.0
    %1331 = vmatprep.subr.mxu0 0.0
    %1332 = vmatpush1.msra.mxu0 0.0
    %1333 = vmatprep.subr.mxu0 0.0
    %1334 = vmatpush1.msra.mxu0 0.0
    %1335 = vmatprep.subr.mxu0 0.0
    %1336 = vmatpush1.msra.mxu0 0.0
    %1337 = vmatprep.subr.mxu0 0.0
    %1338 = vmatpush1.msra.mxu0 0.0
    %1339 = vmatprep.subr.mxu0 0.0
    %1340 = vmatpush1.msra.mxu0 0.0
    %1341 = vmatprep.subr.mxu0 0.0
    %1342 = vmatpush1.msra.mxu0 0.0
    %1343 = vmatprep.subr.mxu0 0.0
    %1344 = vmatpush1.msra.mxu0 0.0
    %1345 = vmatprep.subr.mxu0 0.0
    %1346 = vmatpush1.msra.mxu0 0.0
    %1347 = vmatprep.subr.mxu0 0.0
    %1348 = vmatpush1.msra.mxu0 0.0
    %1349 = vmatprep.subr.mxu0 0.0
    %1350 = vmatpush1.msra.mxu0 0.0
    %1351 = vmatprep.subr.mxu0 0.0
    %1352 = vmatpush1.msra.mxu0 0.0
    %1353 = vmatprep.subr.mxu0 0.0
    %1354 = vmatpush1.msra.mxu0 0.0
    %1355 = vmatprep.subr.mxu0 0.0
    %1356 = vmatpush1.msra.mxu0 0.0
    %1357 = vmatprep.subr.mxu0 0.0
    %1358 = vmatpush1.msra.mxu0 0.0
    %1359 = vmatprep.subr.mxu0 0.0
    %1360 = vmatpush1.msra.mxu0 0.0
    %1361 = vmatprep.subr.mxu0 0.0
    %1362 = vmatpush1.msra.mxu0 0.0
    %1363 = vmatprep.subr.mxu0 0.0
    %1364 = vmatpush1.msra.mxu0 0.0
    %1365 = vmatprep.subr.mxu0 0.0
    %1366 = vmatpush1.msra.mxu0 0.0
    %1367 = vmatprep.subr.mxu0 0.0
    %1368 = vmatpush1.msra.mxu0 0.0
    %1369 = vmatprep.subr.mxu0 0.0
    %1370 = vmatpush1.msra.mxu0 0.0
    %1371 = vmatprep.mubr.f32.mxu0 0.0
    %1372 = vmatmul.mubr.f32.gmra.mrb[0].mxu0 %v1305
    %v1373 = vpop.f32.mrb[0].mxu0
    %v1374 = vadd.f32 0.0, %v1373
    %v1375 = vpop.f32.mrb[0].mxu0
    %1376 = vdwg.mxu0
    %v1377 = vrcp.pop %v1302
    %v1378 = vmul.f32 %v1374, %v1377
    %v1379 = vadd.f32 %v1378, %v1207
    %1380 = vst [vmem:[#allocation2] sm:$0xff] %v1379
    $region14: #{tpu_custom_call.1} parent=5
      #allocation10 [shape = 's32[1]{0}', space=sflag, size = 0x4, scoped, tag = 'scoped memory for tpu_custom_call.1']
      %s1381 = smul.u32 %s7, 8
      %s1382 = smul.addr %s1381, 16
      %s1383 = scalar_lea.hbm %s1, %s1382
      // Predicated region
      $region15: #{tpu_custom_call.1} parent=14 // pred_check
        _
      $region16: #{tpu_custom_call.1} parent=14 // pred_check_branch
        %1385 = sbr.rel target = $region18
      $region17: #{tpu_custom_call.1} parent=14 // pred_region
        %1386 = sst [smem:[#allocation8]] [#allocation12]
        %1387 = sst [smem:[#allocation9]] [#allocation11]
      $region18: #{tpu_custom_call.1} parent=14 // pred_fallthru
        _
      %1389 = shalt.err (0)
      %s1391 = sshll.u32 [#allocation2], 4
      %s1392 = int_to_ptr.vmem [resolvable:$true] %s1391
      %1394 = dma.vmem_to_hbm [thread:$0]  %s1392, 128, %s1383, [#allocation10]
      %s1395 = smul.u32 8, 1
      %s1396 = sshll.u32 %s1395, 4
      %1397 = dma.done [#allocation10], %s1396
  $region6: #{tpu_custom_call.1} parent=0 // loop_footer
    %s11 = sadd.s32 1, %s7
  $region7: #{tpu_custom_call.1} parent=0 // loop_footer_branch
    %6 = sbr.rel target = $region3
  $region8: #{tpu_custom_call.1} parent=0 // loop_exit
    _

</llo_original>
